<compile_context>
chip_gen: v7x
topology: tpu7x:2x2x1
jax: 0.10.0
libtpu: 0.0.40
codegen_flags: <defaults>
</compile_context>

<pallas_src>
import functools
import math

import jax
import jax.numpy as jnp
from jax.experimental import pallas as pl
from jax.experimental.pallas import tpu as pltpu


# ------------------------------ helpers ------------------------------------

def _pick_tile(dim, target, align):
    """Largest legal tile <= target: multiple of `align` dividing dim, else full dim."""
    if dim <= target:
        return dim
    t = (target // align) * align
    while t >= align:
        if dim % t == 0:
            return t
        t -= align
    return dim  # full dim is always a legal block shape


def _erf_approx(x):
    # Abramowitz & Stegun 7.1.26, |err| < 1.5e-7.  Uses only exp/mul/add so it
    # lowers cleanly in Mosaic (avoids depending on a lax.erf lowering).
    a1, a2, a3, a4, a5 = 0.254829592, -0.284496736, 1.421413741, -1.453152027, 1.061405429
    p = 0.3275911
    sgn = jnp.where(x >= 0.0, 1.0, -1.0)
    z = jnp.abs(x)
    t = 1.0 / (1.0 + p * z)
    poly = ((((a5 * t + a4) * t + a3) * t + a2) * t + a1) * t
    return sgn * (1.0 - poly * jnp.exp(-z * z))


def _gelu_exact(x):
    # Matches PyTorch nn.GELU default (exact erf form), up to the erf approx above.
    return x * 0.5 * (1.0 + _erf_approx(x * 0.7071067811865476))


# --------------------------- fused matmul kernel ----------------------------

def _fused_matmul_kernel(*refs, fuse_ln, activation, fuse_residual, eps):
    it = iter(refs)
    x_ref = next(it)
    g_ref = next(it) if fuse_ln else None
    bln_ref = next(it) if fuse_ln else None
    w_ref = next(it)
    b_ref = next(it)
    r_ref = next(it) if fuse_residual else None
    o_ref = next(it)

    x = x_ref[...]
    if fuse_ln:
        xf = x.astype(jnp.float32)
        mu = jnp.mean(xf, axis=-1, keepdims=True)
        var = jnp.mean(jnp.square(xf - mu), axis=-1, keepdims=True)
        xf = (xf - mu) * jax.lax.rsqrt(var + eps)
        xf = xf * g_ref[...].astype(jnp.float32) + bln_ref[...].astype(jnp.float32)
        x = xf.astype(w_ref.dtype)
    else:
        x = x.astype(w_ref.dtype)

    acc = jnp.dot(x, w_ref[...], preferred_element_type=jnp.float32)
    acc = acc + b_ref[...].astype(jnp.float32)
    if activation == "gelu":
        acc = _gelu_exact(acc)
    if fuse_residual:
        acc = acc + r_ref[...].astype(jnp.float32)
    o_ref[...] = acc.astype(o_ref.dtype)


def fused_matmul(x, w, b, *, ln=None, residual=None, activation=None,
                 out_dtype=None, eps=1e-5, tm_target=256, tn_target=512):
    """y = [residual +] act( LN?(x) @ w + b ), tiled over (M, N) with full K."""
    M, K = x.shape
    K2, N = w.shape
    assert K == K2
    tm = _pick_tile(M, tm_target, 8)
    tn = _pick_tile(N, tn_target, 128)
    grid = (M // tm, N // tn)

    in_specs = [pl.BlockSpec((tm, K), lambda i, j: (i, 0))]
    operands = [x]
    fuse_ln = ln is not None
    if fuse_ln:
        g, bln = ln
        in_specs += [pl.BlockSpec((1, K), lambda i, j: (0, 0)),
                     pl.BlockSpec((1, K), lambda i, j: (0, 0))]
        operands += [g.reshape(1, K), bln.reshape(1, K)]
    in_specs += [pl.BlockSpec((K, tn), lambda i, j: (0, j)),
                 pl.BlockSpec((1, tn), lambda i, j: (0, j))]
    operands += [w, b.reshape(1, N)]
    fuse_residual = residual is not None
    if fuse_residual:
        in_specs.append(pl.BlockSpec((tm, tn), lambda i, j: (i, j)))
        operands.append(residual)

    kernel = functools.partial(_fused_matmul_kernel, fuse_ln=fuse_ln,
                               activation=activation,
                               fuse_residual=fuse_residual, eps=eps)
    return pl.pallas_call(
        kernel,
        out_shape=jax.ShapeDtypeStruct((M, N), out_dtype or x.dtype),
        grid=grid,
        in_specs=in_specs,
        out_specs=pl.BlockSpec((tm, tn), lambda i, j: (i, j)),
        compiler_params=pltpu.CompilerParams(
            dimension_semantics=("parallel", "parallel")),
    )(*operands)


# ----------------------------- LayerNorm kernel -----------------------------

def _layernorm_kernel(x_ref, g_ref, b_ref, o_ref, *, eps):
    x = x_ref[...].astype(jnp.float32)
    mu = jnp.mean(x, axis=-1, keepdims=True)
    var = jnp.mean(jnp.square(x - mu), axis=-1, keepdims=True)
    y = (x - mu) * jax.lax.rsqrt(var + eps)
    o_ref[...] = (y * g_ref[...].astype(jnp.float32)
                  + b_ref[...].astype(jnp.float32)).astype(o_ref.dtype)


def layernorm(x, g, b, *, eps=1e-5, tm_target=256):
    M, D = x.shape
    tm = _pick_tile(M, tm_target, 8)
    return pl.pallas_call(
        functools.partial(_layernorm_kernel, eps=eps),
        out_shape=jax.ShapeDtypeStruct((M, D), x.dtype),
        grid=(M // tm,),
        in_specs=[pl.BlockSpec((tm, D), lambda i: (i, 0)),
                  pl.BlockSpec((1, D), lambda i: (0, 0)),
                  pl.BlockSpec((1, D), lambda i: (0, 0))],
        out_specs=pl.BlockSpec((tm, D), lambda i: (i, 0)),
        compiler_params=pltpu.CompilerParams(dimension_semantics=("parallel",)),
    )(x, g.reshape(1, D), b.reshape(1, D))


# ---------------------------- attention kernel ------------------------------

def _mha_kernel(q_ref, k_ref, v_ref, o_ref, *, num_heads, sm_scale):
    # blocks: (1, S, D); all heads of one batch element per program.
    _, S, D = q_ref.shape
    Dh = D // num_heads
    for h in range(num_heads):          # static unroll; 2-D ops only
        sl = pl.ds(h * Dh, Dh)
        qh = q_ref[0, :, sl] * sm_scale                      # (S, Dh), scale folded into q
        kh = k_ref[0, :, sl]
        vh = v_ref[0, :, sl]
        s = jax.lax.dot_general(qh, kh, (((1,), (1,)), ((), ())),
                                preferred_element_type=jnp.float32)   # (S, S), no k.T
        s = s - jnp.max(s, axis=-1, keepdims=True)
        p = jnp.exp(s)
        p = p * pl.reciprocal(jnp.sum(p, axis=-1, keepdims=True), approx=True)
        oh = jax.lax.dot_general(p.astype(vh.dtype), vh, (((1,), (0,)), ((), ())),
                                 preferred_element_type=jnp.float32)  # (S, Dh)
        o_ref[0, :, sl] = oh.astype(o_ref.dtype)


def mha_from_qkv(qkv, *, B, S, D, num_heads):
    """qkv: [B*S, 3D] (q|k|v stacked along the feature dim). Returns [B, S, D]."""
    sm_scale = 1.0 / math.sqrt(D // num_heads)
    kernel = functools.partial(_mha_kernel, num_heads=num_heads, sm_scale=sm_scale)
    out_spec = pl.BlockSpec((1, S, D), lambda b: (b, 0, 0))

    if D % 128 == 0:
        # Read q/k/v directly out of the qkv buffer via index maps (no HBM slicing).
        qkv3 = qkv.reshape(B, S, 3 * D)
        in_specs = [pl.BlockSpec((1, S, D), lambda b, kk=kk: (b, 0, kk)) for kk in range(3)]
        operands = (qkv3, qkv3, qkv3)
    else:
        # Small-D fallback: block of D lanes would violate the (8,128) rule, so
        # split once in glue.
        qkv4 = qkv.reshape(B, S, 3, D)
        spec = pl.BlockSpec((1, S, D), lambda b: (b, 0, 0))
        in_specs = [spec, spec, spec]
        operands = (qkv4[:, :, 0], qkv4[:, :, 1], qkv4[:, :, 2])

    return pl.pallas_call(
        kernel,
        out_shape=jax.ShapeDtypeStruct((B, S, D), qkv.dtype),
        grid=(B,),
        in_specs=in_specs,
        out_specs=out_spec,
        compiler_params=pltpu.CompilerParams(dimension_semantics=("parallel",)),
    )(*operands)


# --------------------------- model (glue in JAX) ----------------------------

def transformer_block(h2d, lp, *, B, S, D, num_heads):
    # h2d: [B*S, D] (pre-norm residual stream)
    # --- multi-head self-attention (ln_1 fused into the QKV matmul) ---
    qkv = fused_matmul(h2d, lp["qkv_w"], lp["qkv_b"],
                       ln=(lp["ln1_g"], lp["ln1_b"]))                  # [B*S, 3D]
    attn = mha_from_qkv(qkv, B=B, S=S, D=D, num_heads=num_heads)       # [B, S, D]
    h2d = fused_matmul(attn.reshape(B * S, D), lp["out_w"], lp["out_b"],
                       residual=h2d)                                   # residual fused

    # --- MLP (ln_2 fused into fc1, residual fused into fc2) ---
    x = fused_matmul(h2d, lp["fc1_w"], lp["fc1_b"],
                     ln=(lp["ln2_g"], lp["ln2_b"]), activation="gelu")
    h2d = fused_matmul(x, lp["fc2_w"], lp["fc2_b"], residual=h2d)
    return h2d


def image_encoder_forward(x, params, *, patch, num_heads):
    # x: [B, C, H, W]  (NCHW, PyTorch conv input layout)
    B, C, H, W = x.shape
    D = params["conv_w"].shape[1]
    cdt = params["conv_w"].dtype

    # patch extraction (glue): conv(kernel=patch, stride=patch, bias=False) ==
    # matmul over flattened non-overlapping patches.
    xp = (x.reshape(B, C, H // patch, patch, W // patch, patch)
           .transpose(0, 2, 4, 1, 3, 5)
           .reshape(B, (H // patch) * (W // patch), C * patch * patch))
    P = xp.shape[1]

    patches = fused_matmul(xp.reshape(B * P, C * patch * patch).astype(cdt),
                           params["conv_w"], params["conv_b"])          # [B*P, D]
    tokens = patches.reshape(B, P, D)

    cls = jnp.broadcast_to(params["cls"].reshape(1, 1, D).astype(tokens.dtype), (B, 1, D))
    tokens = jnp.concatenate([cls, tokens], axis=1) + params["pos"].astype(tokens.dtype)
    S = tokens.shape[1]

    h = layernorm(tokens.reshape(B * S, D), params["ln_pre_g"], params["ln_pre_b"])

    for lp in params["layers"]:
        h = transformer_block(h, lp, B=B, S=S, D=D, num_heads=num_heads)

    cls_out = h.reshape(B, S, D)[:, 0, :]                               # [B, D]
    # ln_post applied to the CLS rows only (as in CLIP), fused into the projection.
    out = fused_matmul(cls_out, params["proj"], params["proj_b"],
                       ln=(params["ln_post_g"], params["ln_post_b"]),
                       out_dtype=jnp.float32)                           # [B, PROJ]
    return out


def vit_classifier_forward(x, params, *, patch, num_heads):
    # ViT_Classifier.forward(x) simply returns image_encoder(x).
    # fc_yes / fc_no / scale are module parameters unused in forward.
    return image_encoder_forward(x, params, patch=patch, num_heads=num_heads)


# ------------------------- deterministic param init -------------------------

def init_params(key, *, C, patch, D, heads, mlp, layers, proj_dim, seq_len):
    del heads
    keys = jax.random.split(key, 8 + 10 * layers)
    ki = iter(range(len(keys)))
    wdt = jnp.bfloat16  # matmul weights in bf16 (MXU native); LN params / biases f32

    def nrm(shape, dtype=jnp.float32, s=0.02):
        nonlocal ki
        return (s * jax.random.normal(keys[next(ki)], shape)).astype(dtype)

    zeros = lambda shape: jnp.zeros(shape, jnp.float32)
    ones = lambda shape: jnp.ones(shape, jnp.float32)

    params = {
        "conv_w": nrm((C * patch * patch, D), wdt),
        "conv_b": zeros((D,)),           # CLIP conv1 has no bias
        "cls": nrm((D,)),
        "pos": nrm((seq_len, D)),
        "ln_pre_g": ones((D,)), "ln_pre_b": zeros((D,)),
        "ln_post_g": ones((D,)), "ln_post_b": zeros((D,)),
        "proj": nrm((D, proj_dim), wdt),
        "proj_b": zeros((proj_dim,)),
        "layers": [],
    }
    for _ in range(layers):
        params["layers"].append({
            "ln1_g": ones((D,)), "ln1_b": zeros((D,)),
            "qkv_w": nrm((D, 3 * D), wdt), "qkv_b": zeros((3 * D,)),
            "out_w": nrm((D, D), wdt), "out_b": zeros((D,)),
            "ln2_g": ones((D,)), "ln2_b": zeros((D,)),
            "fc1_w": nrm((D, mlp), wdt), "fc1_b": zeros((mlp,)),
            "fc2_w": nrm((mlp, D), wdt), "fc2_b": zeros((D,)),
        })
    return params


# ----------------------------------- main ------------------------------------

if __name__ == "__main__":
    B, C, IMG, PATCH = 2, 3, 16, 8
    D, HEADS, MLP, LAYERS, PROJ = 32, 4, 64, 2, 16
    SEQ = (IMG // PATCH) ** 2 + 1  # 4 patches + class token = 5

    key = jax.random.PRNGKey(0)
    k_params, k_x, k_yes, k_no = jax.random.split(key, 4)

    params = init_params(k_params, C=C, patch=PATCH, D=D, heads=HEADS,
                         mlp=MLP, layers=LAYERS, proj_dim=PROJ, seq_len=SEQ)

    # classification_head_yes / _no: parameters of the module, unused in forward
    fc_yes = 0.02 * jax.random.normal(k_yes, (PROJ,), jnp.float32)
    fc_no = 0.02 * jax.random.normal(k_no, (PROJ,), jnp.float32)
    scale = 100  # unused in forward (kept for parity with the PyTorch module)

    x = jax.random.normal(k_x, (B, C, IMG, IMG), jnp.float32)

    fwd = jax.jit(functools.partial(vit_classifier_forward,
                                    patch=PATCH, num_heads=HEADS))
    out = jax.block_until_ready(fwd(x, params))

    assert out.shape == (B, PROJ), out.shape
    assert jnp.all(jnp.isfinite(out))
    print("KERNEL_OK")
</pallas_src>

<mosaic_0001>
module attributes {stable_mosaic.version = 11 : i64} {
  func.func @_fused_matmul_kernel(%arg0: i32, %arg1: i32, %arg2: memref<8x192xbf16, #tpu.memory_space<vmem>>, %arg3: memref<192x32xbf16, #tpu.memory_space<vmem>>, %arg4: memref<1x32xf32, #tpu.memory_space<vmem>>, %arg5: memref<8x32xbf16, #tpu.memory_space<vmem>>) attributes {dimension_semantics = [#tpu.dimension_semantics<parallel>, #tpu.dimension_semantics<parallel>], iteration_bounds = array<i64: 1, 1>, scalar_prefetch = 0 : i64, scratch_operands = 0 : i64, tpu.core_type = #tpu.core_type<tc>, window_params = [{transform_indices = @transform_0, window_bounds = array<i64: 8, 192>}, {transform_indices = @transform_1, window_bounds = array<i64: 192, 32>}, {transform_indices = @transform_2, window_bounds = array<i64: 1, 32>}, {transform_indices = @transform_3, window_bounds = array<i64: 8, 32>}]} {
    %c0 = arith.constant 0 : index
    %c0_0 = arith.constant 0 : index
    %0 = vector.load %arg2[%c0, %c0_0] : memref<8x192xbf16, #tpu.memory_space<vmem>>, vector<8x192xbf16>
    %c0_1 = arith.constant 0 : index
    %c0_2 = arith.constant 0 : index
    %1 = vector.load %arg3[%c0_1, %c0_2] : memref<192x32xbf16, #tpu.memory_space<vmem>>, vector<192x32xbf16>
    %cst = arith.constant dense<0.000000e+00> : vector<8x32xf32>
    %2 = tpu.matmul %0, %1, %cst {dimension_numbers = #tpu.dot_dimension_numbers<[1], [0], [0], [1], [0, 0, 1, 1], [], []>} : vector<8x192xbf16>, vector<192x32xbf16>, vector<8x32xf32> -> vector<8x32xf32>
    %c0_3 = arith.constant 0 : index
    %c0_4 = arith.constant 0 : index
    %3 = vector.load %arg4[%c0_3, %c0_4] : memref<1x32xf32, #tpu.memory_space<vmem>>, vector<1x32xf32>
    %4 = vector.broadcast %3 : vector<1x32xf32> to vector<8x32xf32>
    %5 = arith.addf %2, %4 : vector<8x32xf32>
    %6 = arith.truncf %5 : vector<8x32xf32> to vector<8x32xbf16>
    %c0_5 = arith.constant 0 : index
    %c0_6 = arith.constant 0 : index
    %7 = vector.load %arg5[%c0_5, %c0_6] : memref<8x32xbf16, #tpu.memory_space<vmem>>, vector<8x32xbf16>
    tpu.vector_store %arg5[%c0_5, %c0_6], %6 {strides = array<i32>} : memref<8x32xbf16, #tpu.memory_space<vmem>>, vector<8x32xbf16>,
    return
  }
  func.func @transform_0(%arg0: i32, %arg1: i32) -> (i32, i32) {
    %c0_i32 = arith.constant 0 : i32
    %c0_i32_0 = arith.constant 0 : i32
    return %arg0, %c0_i32 : i32, i32
  }
  func.func @transform_1(%arg0: i32, %arg1: i32) -> (i32, i32) {
    %c0_i32 = arith.constant 0 : i32
    %c0_i32_0 = arith.constant 0 : i32
    return %c0_i32, %arg1 : i32, i32
  }
  func.func @transform_2(%arg0: i32, %arg1: i32) -> (i32, i32) {
    %c0_i32 = arith.constant 0 : i32
    %c0_i32_0 = arith.constant 0 : i32
    return %c0_i32, %arg1 : i32, i32
  }
  func.func @transform_3(%arg0: i32, %arg1: i32) -> (i32, i32) {
    %c0_i32 = arith.constant 0 : i32
    return %arg0, %arg1 : i32, i32
  }
}

module attributes {stable_mosaic.version = 11 : i64} {
  func.func @_layernorm_kernel(%arg0: i32, %arg1: memref<10x32xbf16, #tpu.memory_space<vmem>>, %arg2: memref<1x32xf32, #tpu.memory_space<vmem>>, %arg3: memref<1x32xf32, #tpu.memory_space<vmem>>, %arg4: memref<10x32xbf16, #tpu.memory_space<vmem>>) attributes {dimension_semantics = [#tpu.dimension_semantics<parallel>], iteration_bounds = array<i64: 1>, scalar_prefetch = 0 : i64, scratch_operands = 0 : i64, tpu.core_type = #tpu.core_type<tc>, window_params = [{transform_indices = @transform_0, window_bounds = array<i64: 10, 32>}, {pipeline_mode = #tpu.pipeline_mode<synchronous>, transform_indices = @transform_1, window_bounds = array<i64: 1, 32>}, {pipeline_mode = #tpu.pipeline_mode<synchronous>, transform_indices = @transform_2, window_bounds = array<i64: 1, 32>}, {transform_indices = @transform_3, window_bounds = array<i64: 10, 32>}]} {
    %c0 = arith.constant 0 : index
    %c0_0 = arith.constant 0 : index
    %0 = vector.load %arg1[%c0, %c0_0] : memref<10x32xbf16, #tpu.memory_space<vmem>>, vector<10x32xbf16>
    %1 = arith.extf %0 : vector<10x32xbf16> to vector<10x32xf32>
    %cst = arith.constant dense<0.000000e+00> : vector<10xf32>
    %2 = vector.multi_reduction <add>, %1, %cst [1] : vector<10x32xf32> to vector<10xf32>
    %3 = vector.shape_cast %2 : vector<10xf32> to vector<10x1xf32>
    %cst_1 = arith.constant 3.200000e+01 : f32
    %4 = vector.broadcast %cst_1 : f32 to vector<10x1xf32>
    %5 = arith.divf %3, %4 : vector<10x1xf32>
    %6 = vector.broadcast %5 : vector<10x1xf32> to vector<10x32xf32>
    %7 = arith.subf %1, %6 : vector<10x32xf32>
    %8 = arith.mulf %7, %7 : vector<10x32xf32>
    %cst_2 = arith.constant dense<0.000000e+00> : vector<10xf32>
    %9 = vector.multi_reduction <add>, %8, %cst_2 [1] : vector<10x32xf32> to vector<10xf32>
    %10 = vector.shape_cast %9 : vector<10xf32> to vector<10x1xf32>
    %cst_3 = arith.constant 3.200000e+01 : f32
    %11 = vector.broadcast %cst_3 : f32 to vector<10x1xf32>
    %12 = arith.divf %10, %11 : vector<10x1xf32>
    %13 = vector.broadcast %5 : vector<10x1xf32> to vector<10x32xf32>
    %14 = arith.subf %1, %13 : vector<10x32xf32>
    %cst_4 = arith.constant 9.99999974E-6 : f32
    %15 = vector.broadcast %cst_4 : f32 to vector<10x1xf32>
    %16 = arith.addf %12, %15 : vector<10x1xf32>
    %17 = math.rsqrt %16 : vector<10x1xf32>
    %18 = vector.broadcast %17 : vector<10x1xf32> to vector<10x32xf32>
    %19 = arith.mulf %14, %18 : vector<10x32xf32>
    %c0_5 = arith.constant 0 : index
    %c0_6 = arith.constant 0 : index
    %20 = vector.load %arg2[%c0_5, %c0_6] : memref<1x32xf32, #tpu.memory_space<vmem>>, vector<1x32xf32>
    %21 = vector.broadcast %20 : vector<1x32xf32> to vector<10x32xf32>
    %22 = arith.mulf %19, %21 : vector<10x32xf32>
    %c0_7 = arith.constant 0 : index
    %c0_8 = arith.constant 0 : index
    %23 = vector.load %arg3[%c0_7, %c0_8] : memref<1x32xf32, #tpu.memory_space<vmem>>, vector<1x32xf32>
    %24 = vector.broadcast %23 : vector<1x32xf32> to vector<10x32xf32>
    %25 = arith.addf %22, %24 : vector<10x32xf32>
    %26 = arith.truncf %25 : vector<10x32xf32> to vector<10x32xbf16>
    %c0_9 = arith.constant 0 : index
    %c0_10 = arith.constant 0 : index
    %27 = vector.load %arg4[%c0_9, %c0_10] : memref<10x32xbf16, #tpu.memory_space<vmem>>, vector<10x32xbf16>
    tpu.vector_store %arg4[%c0_9, %c0_10], %26 {strides = array<i32>} : memref<10x32xbf16, #tpu.memory_space<vmem>>, vector<10x32xbf16>,
    return
  }
  func.func @transform_0(%arg0: i32) -> (i32, i32) {
    %c0_i32 = arith.constant 0 : i32
    %c0_i32_0 = arith.constant 0 : i32
    return %arg0, %c0_i32 : i32, i32
  }
  func.func @transform_1(%arg0: i32) -> (i32, i32) {
    %c0_i32 = arith.constant 0 : i32
    %c0_i32_0 = arith.constant 0 : i32
    %c0_i32_1 = arith.constant 0 : i32
    return %c0_i32, %c0_i32_0 : i32, i32
  }
  func.func @transform_2(%arg0: i32) -> (i32, i32) {
    %c0_i32 = arith.constant 0 : i32
    %c0_i32_0 = arith.constant 0 : i32
    %c0_i32_1 = arith.constant 0 : i32
    return %c0_i32, %c0_i32_0 : i32, i32
  }
  func.func @transform_3(%arg0: i32) -> (i32, i32) {
    %c0_i32 = arith.constant 0 : i32
    %c0_i32_0 = arith.constant 0 : i32
    return %arg0, %c0_i32 : i32, i32
  }
}

module attributes {stable_mosaic.version = 11 : i64} {
  func.func @_fused_matmul_kernel(%arg0: i32, %arg1: i32, %arg2: memref<10x32xbf16, #tpu.memory_space<vmem>>, %arg3: memref<1x32xf32, #tpu.memory_space<vmem>>, %arg4: memref<1x32xf32, #tpu.memory_space<vmem>>, %arg5: memref<32x96xbf16, #tpu.memory_space<vmem>>, %arg6: memref<1x96xf32, #tpu.memory_space<vmem>>, %arg7: memref<10x96xbf16, #tpu.memory_space<vmem>>) attributes {dimension_semantics = [#tpu.dimension_semantics<parallel>, #tpu.dimension_semantics<parallel>], iteration_bounds = array<i64: 1, 1>, scalar_prefetch = 0 : i64, scratch_operands = 0 : i64, tpu.core_type = #tpu.core_type<tc>, window_params = [{transform_indices = @transform_0, window_bounds = array<i64: 10, 32>}, {pipeline_mode = #tpu.pipeline_mode<synchronous>, transform_indices = @transform_1, window_bounds = array<i64: 1, 32>}, {pipeline_mode = #tpu.pipeline_mode<synchronous>, transform_indices = @transform_2, window_bounds = array<i64: 1, 32>}, {transform_indices = @transform_3, window_bounds = array<i64: 32, 96>}, {transform_indices = @transform_4, window_bounds = array<i64: 1, 96>}, {transform_indices = @transform_5, window_bounds = array<i64: 10, 96>}]} {
    %c0 = arith.constant 0 : index
    %c0_0 = arith.constant 0 : index
    %0 = vector.load %arg2[%c0, %c0_0] : memref<10x32xbf16, #tpu.memory_space<vmem>>, vector<10x32xbf16>
    %1 = arith.extf %0 : vector<10x32xbf16> to vector<10x32xf32>
    %cst = arith.constant dense<0.000000e+00> : vector<10xf32>
    %2 = vector.multi_reduction <add>, %1, %cst [1] : vector<10x32xf32> to vector<10xf32>
    %3 = vector.shape_cast %2 : vector<10xf32> to vector<10x1xf32>
    %cst_1 = arith.constant 3.200000e+01 : f32
    %4 = vector.broadcast %cst_1 : f32 to vector<10x1xf32>
    %5 = arith.divf %3, %4 : vector<10x1xf32>
    %6 = vector.broadcast %5 : vector<10x1xf32> to vector<10x32xf32>
    %7 = arith.subf %1, %6 : vector<10x32xf32>
    %8 = arith.mulf %7, %7 : vector<10x32xf32>
    %cst_2 = arith.constant dense<0.000000e+00> : vector<10xf32>
    %9 = vector.multi_reduction <add>, %8, %cst_2 [1] : vector<10x32xf32> to vector<10xf32>
    %10 = vector.shape_cast %9 : vector<10xf32> to vector<10x1xf32>
    %cst_3 = arith.constant 3.200000e+01 : f32
    %11 = vector.broadcast %cst_3 : f32 to vector<10x1xf32>
    %12 = arith.divf %10, %11 : vector<10x1xf32>
    %13 = vector.broadcast %5 : vector<10x1xf32> to vector<10x32xf32>
    %14 = arith.subf %1, %13 : vector<10x32xf32>
    %cst_4 = arith.constant 9.99999974E-6 : f32
    %15 = vector.broadcast %cst_4 : f32 to vector<10x1xf32>
    %16 = arith.addf %12, %15 : vector<10x1xf32>
    %17 = math.rsqrt %16 : vector<10x1xf32>
    %18 = vector.broadcast %17 : vector<10x1xf32> to vector<10x32xf32>
    %19 = arith.mulf %14, %18 : vector<10x32xf32>
    %c0_5 = arith.constant 0 : index
    %c0_6 = arith.constant 0 : index
    %20 = vector.load %arg3[%c0_5, %c0_6] : memref<1x32xf32, #tpu.memory_space<vmem>>, vector<1x32xf32>
    %21 = vector.broadcast %20 : vector<1x32xf32> to vector<10x32xf32>
    %22 = arith.mulf %19, %21 : vector<10x32xf32>
    %c0_7 = arith.constant 0 : index
    %c0_8 = arith.constant 0 : index
    %23 = vector.load %arg4[%c0_7, %c0_8] : memref<1x32xf32, #tpu.memory_space<vmem>>, vector<1x32xf32>
    %24 = vector.broadcast %23 : vector<1x32xf32> to vector<10x32xf32>
    %25 = arith.addf %22, %24 : vector<10x32xf32>
    %26 = arith.truncf %25 : vector<10x32xf32> to vector<10x32xbf16>
    %c0_9 = arith.constant 0 : index
    %c0_10 = arith.constant 0 : index
    %27 = vector.load %arg5[%c0_9, %c0_10] : memref<32x96xbf16, #tpu.memory_space<vmem>>, vector<32x96xbf16>
    %cst_11 = arith.constant dense<0.000000e+00> : vector<10x96xf32>
    %28 = tpu.matmul %26, %27, %cst_11 {dimension_numbers = #tpu.dot_dimension_numbers<[1], [0], [0], [1], [0, 0, 1, 1], [], []>} : vector<10x32xbf16>, vector<32x96xbf16>, vector<10x96xf32> -> vector<10x96xf32>
    %c0_12 = arith.constant 0 : index
    %c0_13 = arith.constant 0 : index
    %29 = vector.load %arg6[%c0_12, %c0_13] : memref<1x96xf32, #tpu.memory_space<vmem>>, vector<1x96xf32>
    %30 = vector.broadcast %29 : vector<1x96xf32> to vector<10x96xf32>
    %31 = arith.addf %28, %30 : vector<10x96xf32>
    %32 = arith.truncf %31 : vector<10x96xf32> to vector<10x96xbf16>
    %c0_14 = arith.constant 0 : index
    %c0_15 = arith.constant 0 : index
    %33 = vector.load %arg7[%c0_14, %c0_15] : memref<10x96xbf16, #tpu.memory_space<vmem>>, vector<10x96xbf16>
    tpu.vector_store %arg7[%c0_14, %c0_15], %32 {strides = array<i32>} : memref<10x96xbf16, #tpu.memory_space<vmem>>, vector<10x96xbf16>,
    return
  }
  func.func @transform_0(%arg0: i32, %arg1: i32) -> (i32, i32) {
    %c0_i32 = arith.constant 0 : i32
    %c0_i32_0 = arith.constant 0 : i32
    return %arg0, %c0_i32 : i32, i32
  }
  func.func @transform_1(%arg0: i32, %arg1: i32) -> (i32, i32) {
    %c0_i32 = arith.constant 0 : i32
    %c0_i32_0 = arith.constant 0 : i32
    %c0_i32_1 = arith.constant 0 : i32
    return %c0_i32, %c0_i32_0 : i32, i32
  }
  func.func @transform_2(%arg0: i32, %arg1: i32) -> (i32, i32) {
    %c0_i32 = arith.constant 0 : i32
    %c0_i32_0 = arith.constant 0 : i32
    %c0_i32_1 = arith.constant 0 : i32
    return %c0_i32, %c0_i32_0 : i32, i32
  }
  func.func @transform_3(%arg0: i32, %arg1: i32) -> (i32, i32) {
    %c0_i32 = arith.constant 0 : i32
    %c0_i32_0 = arith.constant 0 : i32
    return %c0_i32, %arg1 : i32, i32
  }
  func.func @transform_4(%arg0: i32, %arg1: i32) -> (i32, i32) {
    %c0_i32 = arith.constant 0 : i32
    %c0_i32_0 = arith.constant 0 : i32
    return %c0_i32, %arg1 : i32, i32
  }
  func.func @transform_5(%arg0: i32, %arg1: i32) -> (i32, i32) {
    %c0_i32 = arith.constant 0 : i32
    return %arg0, %arg1 : i32, i32
  }
}

module attributes {stable_mosaic.version = 11 : i64} {
  func.func @_mha_kernel(%arg0: i32, %arg1: memref<1x5x32xbf16, #tpu.memory_space<vmem>>, %arg2: memref<1x5x32xbf16, #tpu.memory_space<vmem>>, %arg3: memref<1x5x32xbf16, #tpu.memory_space<vmem>>, %arg4: memref<1x5x32xbf16, #tpu.memory_space<vmem>>) attributes {dimension_semantics = [#tpu.dimension_semantics<parallel>], iteration_bounds = array<i64: 2>, scalar_prefetch = 0 : i64, scratch_operands = 0 : i64, tpu.core_type = #tpu.core_type<tc>, window_params = [{transform_indices = @transform_0, window_bounds = array<i64: 1, 5, 32>}, {transform_indices = @transform_1, window_bounds = array<i64: 1, 5, 32>}, {transform_indices = @transform_2, window_bounds = array<i64: 1, 5, 32>}, {transform_indices = @transform_3, window_bounds = array<i64: 1, 5, 32>}]} {
    %c0 = arith.constant 0 : index
    %c0_0 = arith.constant 0 : index
    %c0_1 = arith.constant 0 : index
    %0 = vector.load %arg1[%c0, %c0_0, %c0_1] : memref<1x5x32xbf16, #tpu.memory_space<vmem>>, vector<1x5x8xbf16>
    %1 = vector.shape_cast %0 : vector<1x5x8xbf16> to vector<5x8xbf16>
    %cst = arith.constant 3.535160e-01 : bf16
    %2 = vector.broadcast %cst : bf16 to vector<5x8xbf16>
    %3 = arith.mulf %1, %2 : vector<5x8xbf16>
    %c0_2 = arith.constant 0 : index
    %c0_3 = arith.constant 0 : index
    %c0_4 = arith.constant 0 : index
    %4 = vector.load %arg2[%c0_2, %c0_3, %c0_4] : memref<1x5x32xbf16, #tpu.memory_space<vmem>>, vector<1x5x8xbf16>
    %5 = vector.shape_cast %4 : vector<1x5x8xbf16> to vector<5x8xbf16>
    %c0_5 = arith.constant 0 : index
    %c0_6 = arith.constant 0 : index
    %c0_7 = arith.constant 0 : index
    %6 = vector.load %arg3[%c0_5, %c0_6, %c0_7] : memref<1x5x32xbf16, #tpu.memory_space<vmem>>, vector<1x5x8xbf16>
    %7 = vector.shape_cast %6 : vector<1x5x8xbf16> to vector<5x8xbf16>
    %cst_8 = arith.constant dense<0.000000e+00> : vector<5x5xf32>
    %8 = tpu.matmul %3, %5, %cst_8 {dimension_numbers = #tpu.dot_dimension_numbers<[1], [1], [0], [0], [0, 0, 1, 0], [], []>} : vector<5x8xbf16>, vector<5x8xbf16>, vector<5x5xf32> -> vector<5x5xf32>
    %cst_9 = arith.constant dense<0xFF800000> : vector<5xf32>
    %9 = vector.multi_reduction <maximumf>, %8, %cst_9 [1] : vector<5x5xf32> to vector<5xf32>
    %10 = vector.shape_cast %9 : vector<5xf32> to vector<5x1xf32>
    %11 = vector.broadcast %10 : vector<5x1xf32> to vector<5x5xf32>
    %12 = arith.subf %8, %11 : vector<5x5xf32>
    %13 = math.exp %12 : vector<5x5xf32>
    %cst_10 = arith.constant dense<0.000000e+00> : vector<5xf32>
    %14 = vector.multi_reduction <add>, %13, %cst_10 [1] : vector<5x5xf32> to vector<5xf32>
    %15 = vector.shape_cast %14 : vector<5xf32> to vector<5x1xf32>
    %16 = tpu.reciprocal %15 {approx = true} : vector<5x1xf32> -> vector<5x1xf32>
    %17 = vector.broadcast %16 : vector<5x1xf32> to vector<5x5xf32>
    %18 = arith.mulf %13, %17 : vector<5x5xf32>
    %19 = arith.truncf %18 : vector<5x5xf32> to vector<5x5xbf16>
    %cst_11 = arith.constant dense<0.000000e+00> : vector<5x8xf32>
    %20 = tpu.matmul %19, %7, %cst_11 {dimension_numbers = #tpu.dot_dimension_numbers<[1], [0], [0], [1], [0, 0, 1, 1], [], []>} : vector<5x5xbf16>, vector<5x8xbf16>, vector<5x8xf32> -> vector<5x8xf32>
    %21 = arith.truncf %20 : vector<5x8xf32> to vector<5x8xbf16>
    %c0_12 = arith.constant 0 : index
    %c0_13 = arith.constant 0 : index
    %c0_14 = arith.constant 0 : index
    %22 = vector.load %arg4[%c0_12, %c0_13, %c0_14] : memref<1x5x32xbf16, #tpu.memory_space<vmem>>, vector<1x5x8xbf16>
    %23 = vector.shape_cast %22 : vector<1x5x8xbf16> to vector<5x8xbf16>
    %24 = vector.shape_cast %21 : vector<5x8xbf16> to vector<1x5x8xbf16>
    tpu.vector_store %arg4[%c0_12, %c0_13, %c0_14], %24 {strides = array<i32>} : memref<1x5x32xbf16, #tpu.memory_space<vmem>>, vector<1x5x8xbf16>,
    %c0_15 = arith.constant 0 : index
    %c0_16 = arith.constant 0 : index
    %c8 = arith.constant 8 : index
    %25 = vector.load %arg1[%c0_15, %c0_16, %c8] : memref<1x5x32xbf16, #tpu.memory_space<vmem>>, vector<1x5x8xbf16>
    %26 = vector.shape_cast %25 : vector<1x5x8xbf16> to vector<5x8xbf16>
    %cst_17 = arith.constant 3.535160e-01 : bf16
    %27 = vector.broadcast %cst_17 : bf16 to vector<5x8xbf16>
    %28 = arith.mulf %26, %27 : vector<5x8xbf16>
    %c0_18 = arith.constant 0 : index
    %c0_19 = arith.constant 0 : index
    %c8_20 = arith.constant 8 : index
    %29 = vector.load %arg2[%c0_18, %c0_19, %c8_20] : memref<1x5x32xbf16, #tpu.memory_space<vmem>>, vector<1x5x8xbf16>
    %30 = vector.shape_cast %29 : vector<1x5x8xbf16> to vector<5x8xbf16>
    %c0_21 = arith.constant 0 : index
    %c0_22 = arith.constant 0 : index
    %c8_23 = arith.constant 8 : index
    %31 = vector.load %arg3[%c0_21, %c0_22, %c8_23] : memref<1x5x32xbf16, #tpu.memory_space<vmem>>, vector<1x5x8xbf16>
    %32 = vector.shape_cast %31 : vector<1x5x8xbf16> to vector<5x8xbf16>
    %cst_24 = arith.constant dense<0.000000e+00> : vector<5x5xf32>
    %33 = tpu.matmul %28, %30, %cst_24 {dimension_numbers = #tpu.dot_dimension_numbers<[1], [1], [0], [0], [0, 0, 1, 0], [], []>} : vector<5x8xbf16>, vector<5x8xbf16>, vector<5x5xf32> -> vector<5x5xf32>
    %cst_25 = arith.constant dense<0xFF800000> : vector<5xf32>
    %34 = vector.multi_reduction <maximumf>, %33, %cst_25 [1] : vector<5x5xf32> to vector<5xf32>
    %35 = vector.shape_cast %34 : vector<5xf32> to vector<5x1xf32>
    %36 = vector.broadcast %35 : vector<5x1xf32> to vector<5x5xf32>
    %37 = arith.subf %33, %36 : vector<5x5xf32>
    %38 = math.exp %37 : vector<5x5xf32>
    %cst_26 = arith.constant dense<0.000000e+00> : vector<5xf32>
    %39 = vector.multi_reduction <add>, %38, %cst_26 [1] : vector<5x5xf32> to vector<5xf32>
    %40 = vector.shape_cast %39 : vector<5xf32> to vector<5x1xf32>
    %41 = tpu.reciprocal %40 {approx = true} : vector<5x1xf32> -> vector<5x1xf32>
    %42 = vector.broadcast %41 : vector<5x1xf32> to vector<5x5xf32>
    %43 = arith.mulf %38, %42 : vector<5x5xf32>
    %44 = arith.truncf %43 : vector<5x5xf32> to vector<5x5xbf16>
    %cst_27 = arith.constant dense<0.000000e+00> : vector<5x8xf32>
    %45 = tpu.matmul %44, %32, %cst_27 {dimension_numbers = #tpu.dot_dimension_numbers<[1], [0], [0], [1], [0, 0, 1, 1], [], []>} : vector<5x5xbf16>, vector<5x8xbf16>, vector<5x8xf32> -> vector<5x8xf32>
    %46 = arith.truncf %45 : vector<5x8xf32> to vector<5x8xbf16>
    %c0_28 = arith.constant 0 : index
    %c0_29 = arith.constant 0 : index
    %c8_30 = arith.constant 8 : index
    %47 = vector.load %arg4[%c0_28, %c0_29, %c8_30] : memref<1x5x32xbf16, #tpu.memory_space<vmem>>, vector<1x5x8xbf16>
    %48 = vector.shape_cast %47 : vector<1x5x8xbf16> to vector<5x8xbf16>
    %49 = vector.shape_cast %46 : vector<5x8xbf16> to vector<1x5x8xbf16>
    tpu.vector_store %arg4[%c0_28, %c0_29, %c8_30], %49 {strides = array<i32>} : memref<1x5x32xbf16, #tpu.memory_space<vmem>>, vector<1x5x8xbf16>,
    %c0_31 = arith.constant 0 : index
    %c0_32 = arith.constant 0 : index
    %c16 = arith.constant 16 : index
    %50 = vector.load %arg1[%c0_31, %c0_32, %c16] : memref<1x5x32xbf16, #tpu.memory_space<vmem>>, vector<1x5x8xbf16>
    %51 = vector.shape_cast %50 : vector<1x5x8xbf16> to vector<5x8xbf16>
    %cst_33 = arith.constant 3.535160e-01 : bf16
    %52 = vector.broadcast %cst_33 : bf16 to vector<5x8xbf16>
    %53 = arith.mulf %51, %52 : vector<5x8xbf16>
    %c0_34 = arith.constant 0 : index
    %c0_35 = arith.constant 0 : index
    %c16_36 = arith.constant 16 : index
    %54 = vector.load %arg2[%c0_34, %c0_35, %c16_36] : memref<1x5x32xbf16, #tpu.memory_space<vmem>>, vector<1x5x8xbf16>
    %55 = vector.shape_cast %54 : vector<1x5x8xbf16> to vector<5x8xbf16>
    %c0_37 = arith.constant 0 : index
    %c0_38 = arith.constant 0 : index
    %c16_39 = arith.constant 16 : index
    %56 = vector.load %arg3[%c0_37, %c0_38, %c16_39] : memref<1x5x32xbf16, #tpu.memory_space<vmem>>, vector<1x5x8xbf16>
    %57 = vector.shape_cast %56 : vector<1x5x8xbf16> to vector<5x8xbf16>
    %cst_40 = arith.constant dense<0.000000e+00> : vector<5x5xf32>
    %58 = tpu.matmul %53, %55, %cst_40 {dimension_numbers = #tpu.dot_dimension_numbers<[1], [1], [0], [0], [0, 0, 1, 0], [], []>} : vector<5x8xbf16>, vector<5x8xbf16>, vector<5x5xf32> -> vector<5x5xf32>
    %cst_41 = arith.constant dense<0xFF800000> : vector<5xf32>
    %59 = vector.multi_reduction <maximumf>, %58, %cst_41 [1] : vector<5x5xf32> to vector<5xf32>
    %60 = vector.shape_cast %59 : vector<5xf32> to vector<5x1xf32>
    %61 = vector.broadcast %60 : vector<5x1xf32> to vector<5x5xf32>
    %62 = arith.subf %58, %61 : vector<5x5xf32>
    %63 = math.exp %62 : vector<5x5xf32>
    %cst_42 = arith.constant dense<0.000000e+00> : vector<5xf32>
    %64 = vector.multi_reduction <add>, %63, %cst_42 [1] : vector<5x5xf32> to vector<5xf32>
    %65 = vector.shape_cast %64 : vector<5xf32> to vector<5x1xf32>
    %66 = tpu.reciprocal %65 {approx = true} : vector<5x1xf32> -> vector<5x1xf32>
    %67 = vector.broadcast %66 : vector<5x1xf32> to vector<5x5xf32>
    %68 = arith.mulf %63, %67 : vector<5x5xf32>
    %69 = arith.truncf %68 : vector<5x5xf32> to vector<5x5xbf16>
    %cst_43 = arith.constant dense<0.000000e+00> : vector<5x8xf32>
    %70 = tpu.matmul %69, %57, %cst_43 {dimension_numbers = #tpu.dot_dimension_numbers<[1], [0], [0], [1], [0, 0, 1, 1], [], []>} : vector<5x5xbf16>, vector<5x8xbf16>, vector<5x8xf32> -> vector<5x8xf32>
    %71 = arith.truncf %70 : vector<5x8xf32> to vector<5x8xbf16>
    %c0_44 = arith.constant 0 : index
    %c0_45 = arith.constant 0 : index
    %c16_46 = arith.constant 16 : index
    %72 = vector.load %arg4[%c0_44, %c0_45, %c16_46] : memref<1x5x32xbf16, #tpu.memory_space<vmem>>, vector<1x5x8xbf16>
    %73 = vector.shape_cast %72 : vector<1x5x8xbf16> to vector<5x8xbf16>
    %74 = vector.shape_cast %71 : vector<5x8xbf16> to vector<1x5x8xbf16>
    tpu.vector_store %arg4[%c0_44, %c0_45, %c16_46], %74 {strides = array<i32>} : memref<1x5x32xbf16, #tpu.memory_space<vmem>>, vector<1x5x8xbf16>,
    %c0_47 = arith.constant 0 : index
    %c0_48 = arith.constant 0 : index
    %c24 = arith.constant 24 : index
    %75 = vector.load %arg1[%c0_47, %c0_48, %c24] : memref<1x5x32xbf16, #tpu.memory_space<vmem>>, vector<1x5x8xbf16>
    %76 = vector.shape_cast %75 : vector<1x5x8xbf16> to vector<5x8xbf16>
    %cst_49 = arith.constant 3.535160e-01 : bf16
    %77 = vector.broadcast %cst_49 : bf16 to vector<5x8xbf16>
    %78 = arith.mulf %76, %77 : vector<5x8xbf16>
    %c0_50 = arith.constant 0 : index
    %c0_51 = arith.constant 0 : index
    %c24_52 = arith.constant 24 : index
    %79 = vector.load %arg2[%c0_50, %c0_51, %c24_52] : memref<1x5x32xbf16, #tpu.memory_space<vmem>>, vector<1x5x8xbf16>
    %80 = vector.shape_cast %79 : vector<1x5x8xbf16> to vector<5x8xbf16>
    %c0_53 = arith.constant 0 : index
    %c0_54 = arith.constant 0 : index
    %c24_55 = arith.constant 24 : index
    %81 = vector.load %arg3[%c0_53, %c0_54, %c24_55] : memref<1x5x32xbf16, #tpu.memory_space<vmem>>, vector<1x5x8xbf16>
    %82 = vector.shape_cast %81 : vector<1x5x8xbf16> to vector<5x8xbf16>
    %cst_56 = arith.constant dense<0.000000e+00> : vector<5x5xf32>
    %83 = tpu.matmul %78, %80, %cst_56 {dimension_numbers = #tpu.dot_dimension_numbers<[1], [1], [0], [0], [0, 0, 1, 0], [], []>} : vector<5x8xbf16>, vector<5x8xbf16>, vector<5x5xf32> -> vector<5x5xf32>
    %cst_57 = arith.constant dense<0xFF800000> : vector<5xf32>
    %84 = vector.multi_reduction <maximumf>, %83, %cst_57 [1] : vector<5x5xf32> to vector<5xf32>
    %85 = vector.shape_cast %84 : vector<5xf32> to vector<5x1xf32>
    %86 = vector.broadcast %85 : vector<5x1xf32> to vector<5x5xf32>
    %87 = arith.subf %83, %86 : vector<5x5xf32>
    %88 = math.exp %87 : vector<5x5xf32>
    %cst_58 = arith.constant dense<0.000000e+00> : vector<5xf32>
    %89 = vector.multi_reduction <add>, %88, %cst_58 [1] : vector<5x5xf32> to vector<5xf32>
    %90 = vector.shape_cast %89 : vector<5xf32> to vector<5x1xf32>
    %91 = tpu.reciprocal %90 {approx = true} : vector<5x1xf32> -> vector<5x1xf32>
    %92 = vector.broadcast %91 : vector<5x1xf32> to vector<5x5xf32>
    %93 = arith.mulf %88, %92 : vector<5x5xf32>
    %94 = arith.truncf %93 : vector<5x5xf32> to vector<5x5xbf16>
    %cst_59 = arith.constant dense<0.000000e+00> : vector<5x8xf32>
    %95 = tpu.matmul %94, %82, %cst_59 {dimension_numbers = #tpu.dot_dimension_numbers<[1], [0], [0], [1], [0, 0, 1, 1], [], []>} : vector<5x5xbf16>, vector<5x8xbf16>, vector<5x8xf32> -> vector<5x8xf32>
    %96 = arith.truncf %95 : vector<5x8xf32> to vector<5x8xbf16>
    %c0_60 = arith.constant 0 : index
    %c0_61 = arith.constant 0 : index
    %c24_62 = arith.constant 24 : index
    %97 = vector.load %arg4[%c0_60, %c0_61, %c24_62] : memref<1x5x32xbf16, #tpu.memory_space<vmem>>, vector<1x5x8xbf16>
    %98 = vector.shape_cast %97 : vector<1x5x8xbf16> to vector<5x8xbf16>
    %99 = vector.shape_cast %96 : vector<5x8xbf16> to vector<1x5x8xbf16>
    tpu.vector_store %arg4[%c0_60, %c0_61, %c24_62], %99 {strides = array<i32>} : memref<1x5x32xbf16, #tpu.memory_space<vmem>>, vector<1x5x8xbf16>,
    return
  }
  func.func @transform_0(%arg0: i32) -> (i32, i32, i32) {
    %c0_i32 = arith.constant 0 : i32
    %c0_i32_0 = arith.constant 0 : i32
    %c0_i32_1 = arith.constant 0 : i32
    return %arg0, %c0_i32, %c0_i32_0 : i32, i32, i32
  }
  func.func @transform_1(%arg0: i32) -> (i32, i32, i32) {
    %c0_i32 = arith.constant 0 : i32
    %c0_i32_0 = arith.constant 0 : i32
    %c0_i32_1 = arith.constant 0 : i32
    return %arg0, %c0_i32, %c0_i32_0 : i32, i32, i32
  }
  func.func @transform_2(%arg0: i32) -> (i32, i32, i32) {
    %c0_i32 = arith.constant 0 : i32
    %c0_i32_0 = arith.constant 0 : i32
    %c0_i32_1 = arith.constant 0 : i32
    return %arg0, %c0_i32, %c0_i32_0 : i32, i32, i32
  }
  func.func @transform_3(%arg0: i32) -> (i32, i32, i32) {
    %c0_i32 = arith.constant 0 : i32
    %c0_i32_0 = arith.constant 0 : i32
    %c0_i32_1 = arith.constant 0 : i32
    return %arg0, %c0_i32, %c0_i32_0 : i32, i32, i32
  }
}

module attributes {stable_mosaic.version = 11 : i64} {
  func.func @_fused_matmul_kernel(%arg0: i32, %arg1: i32, %arg2: memref<10x32xbf16, #tpu.memory_space<vmem>>, %arg3: memref<32x32xbf16, #tpu.memory_space<vmem>>, %arg4: memref<1x32xf32, #tpu.memory_space<vmem>>, %arg5: memref<10x32xbf16, #tpu.memory_space<vmem>>, %arg6: memref<10x32xbf16, #tpu.memory_space<vmem>>) attributes {dimension_semantics = [#tpu.dimension_semantics<parallel>, #tpu.dimension_semantics<parallel>], iteration_bounds = array<i64: 1, 1>, scalar_prefetch = 0 : i64, scratch_operands = 0 : i64, tpu.core_type = #tpu.core_type<tc>, window_params = [{transform_indices = @transform_0, window_bounds = array<i64: 10, 32>}, {transform_indices = @transform_1, window_bounds = array<i64: 32, 32>}, {transform_indices = @transform_2, window_bounds = array<i64: 1, 32>}, {transform_indices = @transform_3, window_bounds = array<i64: 10, 32>}, {transform_indices = @transform_4, window_bounds = array<i64: 10, 32>}]} {
    %c0 = arith.constant 0 : index
    %c0_0 = arith.constant 0 : index
    %0 = vector.load %arg2[%c0, %c0_0] : memref<10x32xbf16, #tpu.memory_space<vmem>>, vector<10x32xbf16>
    %c0_1 = arith.constant 0 : index
    %c0_2 = arith.constant 0 : index
    %1 = vector.load %arg3[%c0_1, %c0_2] : memref<32x32xbf16, #tpu.memory_space<vmem>>, vector<32x32xbf16>
    %cst = arith.constant dense<0.000000e+00> : vector<10x32xf32>
    %2 = tpu.matmul %0, %1, %cst {dimension_numbers = #tpu.dot_dimension_numbers<[1], [0], [0], [1], [0, 0, 1, 1], [], []>} : vector<10x32xbf16>, vector<32x32xbf16>, vector<10x32xf32> -> vector<10x32xf32>
    %c0_3 = arith.constant 0 : index
    %c0_4 = arith.constant 0 : index
    %3 = vector.load %arg4[%c0_3, %c0_4] : memref<1x32xf32, #tpu.memory_space<vmem>>, vector<1x32xf32>
    %4 = vector.broadcast %3 : vector<1x32xf32> to vector<10x32xf32>
    %5 = arith.addf %2, %4 : vector<10x32xf32>
    %c0_5 = arith.constant 0 : index
    %c0_6 = arith.constant 0 : index
    %6 = vector.load %arg5[%c0_5, %c0_6] : memref<10x32xbf16, #tpu.memory_space<vmem>>, vector<10x32xbf16>
    %7 = arith.extf %6 : vector<10x32xbf16> to vector<10x32xf32>
    %8 = arith.addf %5, %7 : vector<10x32xf32>
    %9 = arith.truncf %8 : vector<10x32xf32> to vector<10x32xbf16>
    %c0_7 = arith.constant 0 : index
    %c0_8 = arith.constant 0 : index
    %10 = vector.load %arg6[%c0_7, %c0_8] : memref<10x32xbf16, #tpu.memory_space<vmem>>, vector<10x32xbf16>
    tpu.vector_store %arg6[%c0_7, %c0_8], %9 {strides = array<i32>} : memref<10x32xbf16, #tpu.memory_space<vmem>>, vector<10x32xbf16>,
    return
  }
  func.func @transform_0(%arg0: i32, %arg1: i32) -> (i32, i32) {
    %c0_i32 = arith.constant 0 : i32
    %c0_i32_0 = arith.constant 0 : i32
    return %arg0, %c0_i32 : i32, i32
  }
  func.func @transform_1(%arg0: i32, %arg1: i32) -> (i32, i32) {
    %c0_i32 = arith.constant 0 : i32
    %c0_i32_0 = arith.constant 0 : i32
    return %c0_i32, %arg1 : i32, i32
  }
  func.func @transform_2(%arg0: i32, %arg1: i32) -> (i32, i32) {
    %c0_i32 = arith.constant 0 : i32
    %c0_i32_0 = arith.constant 0 : i32
    return %c0_i32, %arg1 : i32, i32
  }
  func.func @transform_3(%arg0: i32, %arg1: i32) -> (i32, i32) {
    %c0_i32 = arith.constant 0 : i32
    return %arg0, %arg1 : i32, i32
  }
  func.func @transform_4(%arg0: i32, %arg1: i32) -> (i32, i32) {
    %c0_i32 = arith.constant 0 : i32
    return %arg0, %arg1 : i32, i32
  }
}

module attributes {stable_mosaic.version = 11 : i64} {
  func.func @_fused_matmul_kernel(%arg0: i32, %arg1: i32, %arg2: memref<10x32xbf16, #tpu.memory_space<vmem>>, %arg3: memref<1x32xf32, #tpu.memory_space<vmem>>, %arg4: memref<1x32xf32, #tpu.memory_space<vmem>>, %arg5: memref<32x64xbf16, #tpu.memory_space<vmem>>, %arg6: memref<1x64xf32, #tpu.memory_space<vmem>>, %arg7: memref<10x64xbf16, #tpu.memory_space<vmem>>) attributes {dimension_semantics = [#tpu.dimension_semantics<parallel>, #tpu.dimension_semantics<parallel>], iteration_bounds = array<i64: 1, 1>, scalar_prefetch = 0 : i64, scratch_operands = 0 : i64, tpu.core_type = #tpu.core_type<tc>, window_params = [{transform_indices = @transform_0, window_bounds = array<i64: 10, 32>}, {pipeline_mode = #tpu.pipeline_mode<synchronous>, transform_indices = @transform_1, window_bounds = array<i64: 1, 32>}, {pipeline_mode = #tpu.pipeline_mode<synchronous>, transform_indices = @transform_2, window_bounds = array<i64: 1, 32>}, {transform_indices = @transform_3, window_bounds = array<i64: 32, 64>}, {transform_indices = @transform_4, window_bounds = array<i64: 1, 64>}, {transform_indices = @transform_5, window_bounds = array<i64: 10, 64>}]} {
    %c0 = arith.constant 0 : index
    %c0_0 = arith.constant 0 : index
    %0 = vector.load %arg2[%c0, %c0_0] : memref<10x32xbf16, #tpu.memory_space<vmem>>, vector<10x32xbf16>
    %1 = arith.extf %0 : vector<10x32xbf16> to vector<10x32xf32>
    %cst = arith.constant dense<0.000000e+00> : vector<10xf32>
    %2 = vector.multi_reduction <add>, %1, %cst [1] : vector<10x32xf32> to vector<10xf32>
    %3 = vector.shape_cast %2 : vector<10xf32> to vector<10x1xf32>
    %cst_1 = arith.constant 3.200000e+01 : f32
    %4 = vector.broadcast %cst_1 : f32 to vector<10x1xf32>
    %5 = arith.divf %3, %4 : vector<10x1xf32>
    %6 = vector.broadcast %5 : vector<10x1xf32> to vector<10x32xf32>
    %7 = arith.subf %1, %6 : vector<10x32xf32>
    %8 = arith.mulf %7, %7 : vector<10x32xf32>
    %cst_2 = arith.constant dense<0.000000e+00> : vector<10xf32>
    %9 = vector.multi_reduction <add>, %8, %cst_2 [1] : vector<10x32xf32> to vector<10xf32>
    %10 = vector.shape_cast %9 : vector<10xf32> to vector<10x1xf32>
    %cst_3 = arith.constant 3.200000e+01 : f32
    %11 = vector.broadcast %cst_3 : f32 to vector<10x1xf32>
    %12 = arith.divf %10, %11 : vector<10x1xf32>
    %13 = vector.broadcast %5 : vector<10x1xf32> to vector<10x32xf32>
    %14 = arith.subf %1, %13 : vector<10x32xf32>
    %cst_4 = arith.constant 9.99999974E-6 : f32
    %15 = vector.broadcast %cst_4 : f32 to vector<10x1xf32>
    %16 = arith.addf %12, %15 : vector<10x1xf32>
    %17 = math.rsqrt %16 : vector<10x1xf32>
    %18 = vector.broadcast %17 : vector<10x1xf32> to vector<10x32xf32>
    %19 = arith.mulf %14, %18 : vector<10x32xf32>
    %c0_5 = arith.constant 0 : index
    %c0_6 = arith.constant 0 : index
    %20 = vector.load %arg3[%c0_5, %c0_6] : memref<1x32xf32, #tpu.memory_space<vmem>>, vector<1x32xf32>
    %21 = vector.broadcast %20 : vector<1x32xf32> to vector<10x32xf32>
    %22 = arith.mulf %19, %21 : vector<10x32xf32>
    %c0_7 = arith.constant 0 : index
    %c0_8 = arith.constant 0 : index
    %23 = vector.load %arg4[%c0_7, %c0_8] : memref<1x32xf32, #tpu.memory_space<vmem>>, vector<1x32xf32>
    %24 = vector.broadcast %23 : vector<1x32xf32> to vector<10x32xf32>
    %25 = arith.addf %22, %24 : vector<10x32xf32>
    %26 = arith.truncf %25 : vector<10x32xf32> to vector<10x32xbf16>
    %c0_9 = arith.constant 0 : index
    %c0_10 = arith.constant 0 : index
    %27 = vector.load %arg5[%c0_9, %c0_10] : memref<32x64xbf16, #tpu.memory_space<vmem>>, vector<32x64xbf16>
    %cst_11 = arith.constant dense<0.000000e+00> : vector<10x64xf32>
    %28 = tpu.matmul %26, %27, %cst_11 {dimension_numbers = #tpu.dot_dimension_numbers<[1], [0], [0], [1], [0, 0, 1, 1], [], []>} : vector<10x32xbf16>, vector<32x64xbf16>, vector<10x64xf32> -> vector<10x64xf32>
    %c0_12 = arith.constant 0 : index
    %c0_13 = arith.constant 0 : index
    %29 = vector.load %arg6[%c0_12, %c0_13] : memref<1x64xf32, #tpu.memory_space<vmem>>, vector<1x64xf32>
    %30 = vector.broadcast %29 : vector<1x64xf32> to vector<10x64xf32>
    %31 = arith.addf %28, %30 : vector<10x64xf32>
    %cst_14 = arith.constant 5.000000e-01 : f32
    %32 = vector.broadcast %cst_14 : f32 to vector<10x64xf32>
    %33 = arith.mulf %31, %32 : vector<10x64xf32>
    %cst_15 = arith.constant 0.707106769 : f32
    %34 = vector.broadcast %cst_15 : f32 to vector<10x64xf32>
    %35 = arith.mulf %31, %34 : vector<10x64xf32>
    %cst_16 = arith.constant 0.000000e+00 : f32
    %36 = vector.broadcast %cst_16 : f32 to vector<10x64xf32>
    %37 = arith.cmpf oge, %35, %36 : vector<10x64xf32>
    %cst_17 = arith.constant 1.000000e+00 : f32
    %cst_18 = arith.constant -1.000000e+00 : f32
    %38 = vector.broadcast %cst_17 : f32 to vector<10x64xf32>
    %39 = vector.broadcast %cst_18 : f32 to vector<10x64xf32>
    %40 = arith.select %37, %38, %39 : vector<10x64xi1>, vector<10x64xf32>
    %41 = math.absf %35 : vector<10x64xf32>
    %cst_19 = arith.constant 0.327591091 : f32
    %42 = vector.broadcast %cst_19 : f32 to vector<10x64xf32>
    %43 = arith.mulf %42, %41 : vector<10x64xf32>
    %cst_20 = arith.constant 1.000000e+00 : f32
    %44 = vector.broadcast %cst_20 : f32 to vector<10x64xf32>
    %45 = arith.addf %44, %43 : vector<10x64xf32>
    %cst_21 = arith.constant 1.000000e+00 : f32
    %46 = vector.broadcast %cst_21 : f32 to vector<10x64xf32>
    %47 = arith.divf %46, %45 : vector<10x64xf32>
    %cst_22 = arith.constant 1.06140542 : f32
    %48 = vector.broadcast %cst_22 : f32 to vector<10x64xf32>
    %49 = arith.mulf %48, %47 : vector<10x64xf32>
    %cst_23 = arith.constant -1.45315206 : f32
    %50 = vector.broadcast %cst_23 : f32 to vector<10x64xf32>
    %51 = arith.addf %49, %50 : vector<10x64xf32>
    %52 = arith.mulf %51, %47 : vector<10x64xf32>
    %cst_24 = arith.constant 1.42141378 : f32
    %53 = vector.broadcast %cst_24 : f32 to vector<10x64xf32>
    %54 = arith.addf %52, %53 : vector<10x64xf32>
    %55 = arith.mulf %54, %47 : vector<10x64xf32>
    %cst_25 = arith.constant -0.284496725 : f32
    %56 = vector.broadcast %cst_25 : f32 to vector<10x64xf32>
    %57 = arith.addf %55, %56 : vector<10x64xf32>
    %58 = arith.mulf %57, %47 : vector<10x64xf32>
    %cst_26 = arith.constant 0.254829586 : f32
    %59 = vector.broadcast %cst_26 : f32 to vector<10x64xf32>
    %60 = arith.addf %58, %59 : vector<10x64xf32>
    %61 = arith.mulf %60, %47 : vector<10x64xf32>
    %cst_27 = arith.constant 0.000000e+00 : f32
    %62 = vector.broadcast %cst_27 : f32 to vector<10x64xf32>
    %63 = arith.subf %62, %41 : vector<10x64xf32>
    %64 = arith.mulf %63, %41 : vector<10x64xf32>
    %65 = math.exp %64 : vector<10x64xf32>
    %66 = arith.mulf %61, %65 : vector<10x64xf32>
    %cst_28 = arith.constant 1.000000e+00 : f32
    %67 = vector.broadcast %cst_28 : f32 to vector<10x64xf32>
    %68 = arith.subf %67, %66 : vector<10x64xf32>
    %69 = arith.mulf %40, %68 : vector<10x64xf32>
    %cst_29 = arith.constant 1.000000e+00 : f32
    %70 = vector.broadcast %cst_29 : f32 to vector<10x64xf32>
    %71 = arith.addf %70, %69 : vector<10x64xf32>
    %72 = arith.mulf %33, %71 : vector<10x64xf32>
    %73 = arith.truncf %72 : vector<10x64xf32> to vector<10x64xbf16>
    %c0_30 = arith.constant 0 : index
    %c0_31 = arith.constant 0 : index
    %74 = vector.load %arg7[%c0_30, %c0_31] : memref<10x64xbf16, #tpu.memory_space<vmem>>, vector<10x64xbf16>
    tpu.vector_store %arg7[%c0_30, %c0_31], %73 {strides = array<i32>} : memref<10x64xbf16, #tpu.memory_space<vmem>>, vector<10x64xbf16>,
    return
  }
  func.func @transform_0(%arg0: i32, %arg1: i32) -> (i32, i32) {
    %c0_i32 = arith.constant 0 : i32
    %c0_i32_0 = arith.constant 0 : i32
    return %arg0, %c0_i32 : i32, i32
  }
  func.func @transform_1(%arg0: i32, %arg1: i32) -> (i32, i32) {
    %c0_i32 = arith.constant 0 : i32
    %c0_i32_0 = arith.constant 0 : i32
    %c0_i32_1 = arith.constant 0 : i32
    return %c0_i32, %c0_i32_0 : i32, i32
  }
  func.func @transform_2(%arg0: i32, %arg1: i32) -> (i32, i32) {
    %c0_i32 = arith.constant 0 : i32
    %c0_i32_0 = arith.constant 0 : i32
    %c0_i32_1 = arith.constant 0 : i32
    return %c0_i32, %c0_i32_0 : i32, i32
  }
  func.func @transform_3(%arg0: i32, %arg1: i32) -> (i32, i32) {
    %c0_i32 = arith.constant 0 : i32
    %c0_i32_0 = arith.constant 0 : i32
    return %c0_i32, %arg1 : i32, i32
  }
  func.func @transform_4(%arg0: i32, %arg1: i32) -> (i32, i32) {
    %c0_i32 = arith.constant 0 : i32
    %c0_i32_0 = arith.constant 0 : i32
    return %c0_i32, %arg1 : i32, i32
  }
  func.func @transform_5(%arg0: i32, %arg1: i32) -> (i32, i32) {
    %c0_i32 = arith.constant 0 : i32
    return %arg0, %arg1 : i32, i32
  }
}

module attributes {stable_mosaic.version = 11 : i64} {
  func.func @_fused_matmul_kernel(%arg0: i32, %arg1: i32, %arg2: memref<10x64xbf16, #tpu.memory_space<vmem>>, %arg3: memref<64x32xbf16, #tpu.memory_space<vmem>>, %arg4: memref<1x32xf32, #tpu.memory_space<vmem>>, %arg5: memref<10x32xbf16, #tpu.memory_space<vmem>>, %arg6: memref<10x32xbf16, #tpu.memory_space<vmem>>) attributes {dimension_semantics = [#tpu.dimension_semantics<parallel>, #tpu.dimension_semantics<parallel>], iteration_bounds = array<i64: 1, 1>, scalar_prefetch = 0 : i64, scratch_operands = 0 : i64, tpu.core_type = #tpu.core_type<tc>, window_params = [{transform_indices = @transform_0, window_bounds = array<i64: 10, 64>}, {transform_indices = @transform_1, window_bounds = array<i64: 64, 32>}, {transform_indices = @transform_2, window_bounds = array<i64: 1, 32>}, {transform_indices = @transform_3, window_bounds = array<i64: 10, 32>}, {transform_indices = @transform_4, window_bounds = array<i64: 10, 32>}]} {
    %c0 = arith.constant 0 : index
    %c0_0 = arith.constant 0 : index
    %0 = vector.load %arg2[%c0, %c0_0] : memref<10x64xbf16, #tpu.memory_space<vmem>>, vector<10x64xbf16>
    %c0_1 = arith.constant 0 : index
    %c0_2 = arith.constant 0 : index
    %1 = vector.load %arg3[%c0_1, %c0_2] : memref<64x32xbf16, #tpu.memory_space<vmem>>, vector<64x32xbf16>
    %cst = arith.constant dense<0.000000e+00> : vector<10x32xf32>
    %2 = tpu.matmul %0, %1, %cst {dimension_numbers = #tpu.dot_dimension_numbers<[1], [0], [0], [1], [0, 0, 1, 1], [], []>} : vector<10x64xbf16>, vector<64x32xbf16>, vector<10x32xf32> -> vector<10x32xf32>
    %c0_3 = arith.constant 0 : index
    %c0_4 = arith.constant 0 : index
    %3 = vector.load %arg4[%c0_3, %c0_4] : memref<1x32xf32, #tpu.memory_space<vmem>>, vector<1x32xf32>
    %4 = vector.broadcast %3 : vector<1x32xf32> to vector<10x32xf32>
    %5 = arith.addf %2, %4 : vector<10x32xf32>
    %c0_5 = arith.constant 0 : index
    %c0_6 = arith.constant 0 : index
    %6 = vector.load %arg5[%c0_5, %c0_6] : memref<10x32xbf16, #tpu.memory_space<vmem>>, vector<10x32xbf16>
    %7 = arith.extf %6 : vector<10x32xbf16> to vector<10x32xf32>
    %8 = arith.addf %5, %7 : vector<10x32xf32>
    %9 = arith.truncf %8 : vector<10x32xf32> to vector<10x32xbf16>
    %c0_7 = arith.constant 0 : index
    %c0_8 = arith.constant 0 : index
    %10 = vector.load %arg6[%c0_7, %c0_8] : memref<10x32xbf16, #tpu.memory_space<vmem>>, vector<10x32xbf16>
    tpu.vector_store %arg6[%c0_7, %c0_8], %9 {strides = array<i32>} : memref<10x32xbf16, #tpu.memory_space<vmem>>, vector<10x32xbf16>,
    return
  }
  func.func @transform_0(%arg0: i32, %arg1: i32) -> (i32, i32) {
    %c0_i32 = arith.constant 0 : i32
    %c0_i32_0 = arith.constant 0 : i32
    return %arg0, %c0_i32 : i32, i32
  }
  func.func @transform_1(%arg0: i32, %arg1: i32) -> (i32, i32) {
    %c0_i32 = arith.constant 0 : i32
    %c0_i32_0 = arith.constant 0 : i32
    return %c0_i32, %arg1 : i32, i32
  }
  func.func @transform_2(%arg0: i32, %arg1: i32) -> (i32, i32) {
    %c0_i32 = arith.constant 0 : i32
    %c0_i32_0 = arith.constant 0 : i32
    return %c0_i32, %arg1 : i32, i32
  }
  func.func @transform_3(%arg0: i32, %arg1: i32) -> (i32, i32) {
    %c0_i32 = arith.constant 0 : i32
    return %arg0, %arg1 : i32, i32
  }
  func.func @transform_4(%arg0: i32, %arg1: i32) -> (i32, i32) {
    %c0_i32 = arith.constant 0 : i32
    return %arg0, %arg1 : i32, i32
  }
}

module attributes {stable_mosaic.version = 11 : i64} {
  func.func @_fused_matmul_kernel(%arg0: i32, %arg1: i32, %arg2: memref<2x32xbf16, #tpu.memory_space<vmem>>, %arg3: memref<1x32xf32, #tpu.memory_space<vmem>>, %arg4: memref<1x32xf32, #tpu.memory_space<vmem>>, %arg5: memref<32x16xbf16, #tpu.memory_space<vmem>>, %arg6: memref<1x16xf32, #tpu.memory_space<vmem>>, %arg7: memref<2x16xf32, #tpu.memory_space<vmem>>) attributes {dimension_semantics = [#tpu.dimension_semantics<parallel>, #tpu.dimension_semantics<parallel>], iteration_bounds = array<i64: 1, 1>, scalar_prefetch = 0 : i64, scratch_operands = 0 : i64, tpu.core_type = #tpu.core_type<tc>, window_params = [{transform_indices = @transform_0, window_bounds = array<i64: 2, 32>}, {pipeline_mode = #tpu.pipeline_mode<synchronous>, transform_indices = @transform_1, window_bounds = array<i64: 1, 32>}, {pipeline_mode = #tpu.pipeline_mode<synchronous>, transform_indices = @transform_2, window_bounds = array<i64: 1, 32>}, {transform_indices = @transform_3, window_bounds = array<i64: 32, 16>}, {transform_indices = @transform_4, window_bounds = array<i64: 1, 16>}, {transform_indices = @transform_5, window_bounds = array<i64: 2, 16>}]} {
    %c0 = arith.constant 0 : index
    %c0_0 = arith.constant 0 : index
    %0 = vector.load %arg2[%c0, %c0_0] : memref<2x32xbf16, #tpu.memory_space<vmem>>, vector<2x32xbf16>
    %1 = arith.extf %0 : vector<2x32xbf16> to vector<2x32xf32>
    %cst = arith.constant dense<0.000000e+00> : vector<2xf32>
    %2 = vector.multi_reduction <add>, %1, %cst [1] : vector<2x32xf32> to vector<2xf32>
    %3 = vector.shape_cast %2 : vector<2xf32> to vector<2x1xf32>
    %cst_1 = arith.constant 3.200000e+01 : f32
    %4 = vector.broadcast %cst_1 : f32 to vector<2x1xf32>
    %5 = arith.divf %3, %4 : vector<2x1xf32>
    %6 = vector.broadcast %5 : vector<2x1xf32> to vector<2x32xf32>
    %7 = arith.subf %1, %6 : vector<2x32xf32>
    %8 = arith.mulf %7, %7 : vector<2x32xf32>
    %cst_2 = arith.constant dense<0.000000e+00> : vector<2xf32>
    %9 = vector.multi_reduction <add>, %8, %cst_2 [1] : vector<2x32xf32> to vector<2xf32>
    %10 = vector.shape_cast %9 : vector<2xf32> to vector<2x1xf32>
    %cst_3 = arith.constant 3.200000e+01 : f32
    %11 = vector.broadcast %cst_3 : f32 to vector<2x1xf32>
    %12 = arith.divf %10, %11 : vector<2x1xf32>
    %13 = vector.broadcast %5 : vector<2x1xf32> to vector<2x32xf32>
    %14 = arith.subf %1, %13 : vector<2x32xf32>
    %cst_4 = arith.constant 9.99999974E-6 : f32
    %15 = vector.broadcast %cst_4 : f32 to vector<2x1xf32>
    %16 = arith.addf %12, %15 : vector<2x1xf32>
    %17 = math.rsqrt %16 : vector<2x1xf32>
    %18 = vector.broadcast %17 : vector<2x1xf32> to vector<2x32xf32>
    %19 = arith.mulf %14, %18 : vector<2x32xf32>
    %c0_5 = arith.constant 0 : index
    %c0_6 = arith.constant 0 : index
    %20 = vector.load %arg3[%c0_5, %c0_6] : memref<1x32xf32, #tpu.memory_space<vmem>>, vector<1x32xf32>
    %21 = vector.broadcast %20 : vector<1x32xf32> to vector<2x32xf32>
    %22 = arith.mulf %19, %21 : vector<2x32xf32>
    %c0_7 = arith.constant 0 : index
    %c0_8 = arith.constant 0 : index
    %23 = vector.load %arg4[%c0_7, %c0_8] : memref<1x32xf32, #tpu.memory_space<vmem>>, vector<1x32xf32>
    %24 = vector.broadcast %23 : vector<1x32xf32> to vector<2x32xf32>
    %25 = arith.addf %22, %24 : vector<2x32xf32>
    %26 = arith.truncf %25 : vector<2x32xf32> to vector<2x32xbf16>
    %c0_9 = arith.constant 0 : index
    %c0_10 = arith.constant 0 : index
    %27 = vector.load %arg5[%c0_9, %c0_10] : memref<32x16xbf16, #tpu.memory_space<vmem>>, vector<32x16xbf16>
    %cst_11 = arith.constant dense<0.000000e+00> : vector<2x16xf32>
    %28 = tpu.matmul %26, %27, %cst_11 {dimension_numbers = #tpu.dot_dimension_numbers<[1], [0], [0], [1], [0, 0, 1, 1], [], []>} : vector<2x32xbf16>, vector<32x16xbf16>, vector<2x16xf32> -> vector<2x16xf32>
    %c0_12 = arith.constant 0 : index
    %c0_13 = arith.constant 0 : index
    %29 = vector.load %arg6[%c0_12, %c0_13] : memref<1x16xf32, #tpu.memory_space<vmem>>, vector<1x16xf32>
    %30 = vector.broadcast %29 : vector<1x16xf32> to vector<2x16xf32>
    %31 = arith.addf %28, %30 : vector<2x16xf32>
    %c0_14 = arith.constant 0 : index
    %c0_15 = arith.constant 0 : index
    %32 = vector.load %arg7[%c0_14, %c0_15] : memref<2x16xf32, #tpu.memory_space<vmem>>, vector<2x16xf32>
    tpu.vector_store %arg7[%c0_14, %c0_15], %31 {strides = array<i32>} : memref<2x16xf32, #tpu.memory_space<vmem>>, vector<2x16xf32>,
    return
  }
  func.func @transform_0(%arg0: i32, %arg1: i32) -> (i32, i32) {
    %c0_i32 = arith.constant 0 : i32
    %c0_i32_0 = arith.constant 0 : i32
    return %arg0, %c0_i32 : i32, i32
  }
  func.func @transform_1(%arg0: i32, %arg1: i32) -> (i32, i32) {
    %c0_i32 = arith.constant 0 : i32
    %c0_i32_0 = arith.constant 0 : i32
    %c0_i32_1 = arith.constant 0 : i32
    return %c0_i32, %c0_i32_0 : i32, i32
  }
  func.func @transform_2(%arg0: i32, %arg1: i32) -> (i32, i32) {
    %c0_i32 = arith.constant 0 : i32
    %c0_i32_0 = arith.constant 0 : i32
    %c0_i32_1 = arith.constant 0 : i32
    return %c0_i32, %c0_i32_0 : i32, i32
  }
  func.func @transform_3(%arg0: i32, %arg1: i32) -> (i32, i32) {
    %c0_i32 = arith.constant 0 : i32
    %c0_i32_0 = arith.constant 0 : i32
    return %c0_i32, %arg1 : i32, i32
  }
  func.func @transform_4(%arg0: i32, %arg1: i32) -> (i32, i32) {
    %c0_i32 = arith.constant 0 : i32
    %c0_i32_0 = arith.constant 0 : i32
    return %c0_i32, %arg1 : i32, i32
  }
  func.func @transform_5(%arg0: i32, %arg1: i32) -> (i32, i32) {
    %c0_i32 = arith.constant 0 : i32
    return %arg0, %arg1 : i32, i32
  }
}

</mosaic_0001>

<llo_original>
// kernel: vit_classifier_forward.14
$region0: #{vit_classifier_forward.14}
  #allocation0 [shape = 'u32[]', space=smem, size = 0x4, offset = 0x4, fixed_abs, tag = 'smem constant byte address 0x4 - core index']
  #allocation1 [shape = 'u32[144,128]{1,0:T(1,128)}', space=vmem, size = 0x12000, scoped, tag = 'internal scratch']
  %s0 = inlined_call_operand.vmem [shape: bf16[10,32], index: 0, kind: input, shape index: {}]
  %s1 = inlined_call_operand.vmem [shape: f32[1,32], index: 1, kind: input, shape index: {}]
  %s2 = inlined_call_operand.vmem [shape: f32[1,32], index: 2, kind: input, shape index: {}]
  %s3 = inlined_call_operand.vmem [shape: bf16[10,32], index: 3, kind: output, shape index: {}]
  %s4 = sld [smem:[#allocation0]]
  $region22: #{vit_classifier_forward.14} parent=0
    _
  %s6 = ssub.s32 1, %s4
  %s7 = scalar_select 0, %s6, %s4
  // Predicated region
  $region2: #{vit_classifier_forward.14} parent=0 // pred_check
    _
  $region3: #{vit_classifier_forward.14} parent=0 // pred_check_branch
    %9 = sbr.rel (0) target = $region5
  $region4: #{vit_classifier_forward.14} parent=0 // pred_region
    _
  $region5: #{vit_classifier_forward.14} parent=0 // pred_fallthru
    _
  // Predicated region
  $region6: #{vit_classifier_forward.14} parent=0 // pred_check
    _
  $region7: #{vit_classifier_forward.14} parent=0 // pred_check_branch
    %11 = sbr.rel (0) target = $region9
  $region8: #{vit_classifier_forward.14} parent=0 // pred_region
    _
  $region9: #{vit_classifier_forward.14} parent=0 // pred_fallthru
    _
  // Predicated region
  $region10: #{vit_classifier_forward.14} parent=0 // pred_check
    _
  $region11: #{vit_classifier_forward.14} parent=0 // pred_check_branch
    %13 = sbr.rel (0) target = $region13
  $region12: #{vit_classifier_forward.14} parent=0 // pred_region
    _
  $region13: #{vit_classifier_forward.14} parent=0 // pred_fallthru
    _
  %v14 = vld [vmem:[%s0] sm:$0xf]
  %v15 = vld [vmem:[%s0 + $0x4] sm:$0x1]
  %v16 = vunpack.c.l.bf16 %v14
  %v17 = vunpack.c.l.bf16 %v15
  %vm18 = vcmask 261120
  %v19 = vsel %vm18, %v16, 0.0
  %20 = vadd.xlane.f32.xlu0 %v19
  %v21 = vpop.xlane.xlu0 %20
  %vm22 = vcmask 254976
  %v23 = vsel %vm22, %v17, 0.0
  %24 = vadd.xlane.f32.xlu0 %v23
  %v25 = vpop.xlane.xlu0 %24
  %v26 = vrcp.pop 32.0
  %v27 = vmul.f32 %v21, %v26
  %v28 = vmul.f32 %v25, %v26
  %v29 = vsub.f32 %v16, %v27
  %v30 = vsub.f32 %v17, %v28
  %v31 = vmul.f32 %v29, %v29
  %v32 = vmul.f32 %v30, %v30
  %v33 = vsel %vm18, %v31, 0.0
  %34 = vadd.xlane.f32.xlu0 %v33
  %v35 = vpop.xlane.xlu0 %34
  %v36 = vsel %vm22, %v32, 0.0
  %37 = vadd.xlane.f32.xlu0 %v36
  %v38 = vpop.xlane.xlu0 %37
  %v39 = vmul.f32 %v35, %v26
  %v40 = vmul.f32 %v38, %v26
  %v41 = vadd.f32 %v39, 1e-05
  %v42 = vadd.f32 %v40, 1e-05
  %v43 = vrsqrt.pop %v41
  %v44 = vrsqrt.pop %v42
  %v45 = vmul.f32 %v29, %v43
  %v46 = vmul.f32 %v30, %v44
  %v47 = vld [vmem:[%s1] sm:$0x1]
  %v49 = vlaneseq
  %v50 = vshrl.u32 %v49, 7
  %v51 = vsub.s32 0, %v50
  %v52 = vrot.slane %v47, %v51
  %v54 = vmul.f32 %v45, %v52
  %v55 = vmul.f32 %v46, %v52
  %v56 = vld [vmem:[%s2] sm:$0x1]
  %v58 = vlaneseq
  %v59 = vshrl.u32 %v58, 7
  %v60 = vsub.s32 0, %v59
  %v61 = vrot.slane %v56, %v60
  %v63 = vadd.f32 %v54, %v61
  %v64 = vadd.f32 %v55, %v61
  %v65 = vpack.c.bf16 %v64, %v63
  %v67 = vunpack.c.l.b16 %v65
  %v68 = vunpack.c.h.b16 %v65
  %v69 = vpack.c.b16 %v67, %v67
  %v70 = vpack.c.b16 %v68, %v68
  %vm73 = vcmask 257024
  %74 = vst.msk [vmem:[%s3] sm:$0xf] %vm73, %v69
  %vm75 = vcmask 253952
  %76 = vst.msk [vmem:[%s3 + $0x4] sm:$0x1] %vm75, %v70
  // Predicated region
  $region14: #{vit_classifier_forward.14} parent=0 // pred_check
    _
  $region15: #{vit_classifier_forward.14} parent=0 // pred_check_branch
    %78 = sbr.rel (0) target = $region17
  $region16: #{vit_classifier_forward.14} parent=0 // pred_region
    _
  $region17: #{vit_classifier_forward.14} parent=0 // pred_fallthru
    _
  // Predicated region
  $region18: #{vit_classifier_forward.14} parent=0 // pred_check
    _
  $region19: #{vit_classifier_forward.14} parent=0 // pred_check_branch
    %80 = sbr.rel (0) target = $region21
  $region20: #{vit_classifier_forward.14} parent=0 // pred_region
    _
  $region21: #{vit_classifier_forward.14} parent=0 // pred_fallthru
    _

// kernel: vit_classifier_forward.13
$region0: #{vit_classifier_forward.13}
  #allocation0 [shape = 'u32[]', space=smem, size = 0x4, offset = 0x4, fixed_abs, tag = 'smem constant byte address 0x4 - core index']
  #allocation1 [shape = 'u32[144,128]{1,0:T(1,128)}', space=vmem, size = 0x12000, scoped, tag = 'internal scratch']
  %s0 = inlined_call_operand.vmem [shape: bf16[8,192], index: 0, kind: input, shape index: {}]
  %s1 = inlined_call_operand.vmem [shape: bf16[192,32], index: 1, kind: input, shape index: {}]
  %s2 = inlined_call_operand.vmem [shape: f32[1,32], index: 2, kind: input, shape index: {}]
  %s3 = inlined_call_operand.vmem [shape: bf16[8,32], index: 3, kind: output, shape index: {}]
  %s4 = sld [smem:[#allocation0]]
  $region22: #{vit_classifier_forward.13} parent=0
    _
  %s6 = ssub.s32 1, %s4
  %s7 = scalar_select 0, %s6, %s4
  // Predicated region
  $region2: #{vit_classifier_forward.13} parent=0 // pred_check
    _
  $region3: #{vit_classifier_forward.13} parent=0 // pred_check_branch
    %9 = sbr.rel (0) target = $region5
  $region4: #{vit_classifier_forward.13} parent=0 // pred_region
    _
  $region5: #{vit_classifier_forward.13} parent=0 // pred_fallthru
    _
  // Predicated region
  $region6: #{vit_classifier_forward.13} parent=0 // pred_check
    _
  $region7: #{vit_classifier_forward.13} parent=0 // pred_check_branch
    %11 = sbr.rel (0) target = $region9
  $region8: #{vit_classifier_forward.13} parent=0 // pred_region
    _
  $region9: #{vit_classifier_forward.13} parent=0 // pred_fallthru
    _
  // Predicated region
  $region10: #{vit_classifier_forward.13} parent=0 // pred_check
    _
  $region11: #{vit_classifier_forward.13} parent=0 // pred_check_branch
    %13 = sbr.rel (0) target = $region13
  $region12: #{vit_classifier_forward.13} parent=0 // pred_region
    _
  $region13: #{vit_classifier_forward.13} parent=0 // pred_fallthru
    _
  %v15 = vld [vmem:[%s0] sm:$0xff]
  %v16 = vld [vmem:[%s1] sm:$0xf]
  %v17 = vld [vmem:[%s1 + $0x4] sm:$0xf]
  %v18 = vld [vmem:[%s1 + $0x8] sm:$0xf]
  %v19 = vld [vmem:[%s1 + $0xc] sm:$0xf]
  %v20 = vld [vmem:[%s1 + $0x10] sm:$0xf]
  %v21 = vld [vmem:[%s1 + $0x14] sm:$0xf]
  %v22 = vld [vmem:[%s1 + $0x18] sm:$0xf]
  %v23 = vld [vmem:[%s1 + $0x1c] sm:$0xf]
  %v24 = vld [vmem:[%s1 + $0x20] sm:$0xf]
  %v25 = vld [vmem:[%s1 + $0x24] sm:$0xf]
  %v26 = vld [vmem:[%s1 + $0x28] sm:$0xf]
  %v27 = vld [vmem:[%s1 + $0x2c] sm:$0xf]
  %v28 = vld [vmem:[%s1 + $0x30] sm:$0xf]
  %v29 = vld [vmem:[%s1 + $0x34] sm:$0xf]
  %v30 = vld [vmem:[%s1 + $0x38] sm:$0xf]
  %v31 = vld [vmem:[%s1 + $0x3c] sm:$0xf]
  %v32 = vld [vmem:[%s1 + $0x40] sm:$0xf]
  %v33 = vld [vmem:[%s1 + $0x44] sm:$0xf]
  %v34 = vld [vmem:[%s1 + $0x48] sm:$0xf]
  %v35 = vld [vmem:[%s1 + $0x4c] sm:$0xf]
  %v36 = vld [vmem:[%s1 + $0x50] sm:$0xf]
  %v37 = vld [vmem:[%s1 + $0x54] sm:$0xf]
  %v38 = vld [vmem:[%s1 + $0x58] sm:$0xf]
  %v39 = vld [vmem:[%s1 + $0x5c] sm:$0xf]
  %v40 = vld [vmem:[%s2] sm:$0x1]
  %v42 = vlaneseq
  %v43 = vshrl.u32 %v42, 7
  %v44 = vsub.s32 0, %v43
  %v45 = vrot.slane %v40, %v44
  %v48 = vunpack.c.l.b16 %v15
  %v49 = vunpack.c.h.b16 %v15
  %v50 = vpack.c.b16 %v48, %v48
  %v51 = vpack.c.b16 %v49, %v49
  %v77 = vunpack.c.l.b16 %v16
  %v78 = vunpack.c.l.b16 %v17
  %v79 = vunpack.c.l.b16 %v18
  %v80 = vunpack.c.l.b16 %v19
  %v81 = vunpack.c.l.b16 %v20
  %v82 = vunpack.c.l.b16 %v21
  %v83 = vunpack.c.l.b16 %v22
  %v84 = vunpack.c.l.b16 %v23
  %v85 = vunpack.c.l.b16 %v24
  %v86 = vunpack.c.l.b16 %v25
  %v87 = vunpack.c.l.b16 %v26
  %v88 = vunpack.c.l.b16 %v27
  %v89 = vunpack.c.l.b16 %v28
  %v90 = vunpack.c.l.b16 %v29
  %v91 = vunpack.c.l.b16 %v30
  %v92 = vunpack.c.l.b16 %v31
  %v93 = vunpack.c.l.b16 %v32
  %v94 = vunpack.c.l.b16 %v33
  %v95 = vunpack.c.l.b16 %v34
  %v96 = vunpack.c.l.b16 %v35
  %v97 = vunpack.c.l.b16 %v36
  %v98 = vunpack.c.l.b16 %v37
  %v99 = vunpack.c.l.b16 %v38
  %v100 = vunpack.c.l.b16 %v39
  %v101 = vpack.c.b16 %v78, %v77
  %v102 = vpack.c.b16 %v80, %v79
  %v103 = vpack.c.b16 %v82, %v81
  %v104 = vpack.c.b16 %v84, %v83
  %v105 = vpack.c.b16 %v86, %v85
  %v106 = vpack.c.b16 %v88, %v87
  %v107 = vpack.c.b16 %v90, %v89
  %v108 = vpack.c.b16 %v92, %v91
  %v109 = vpack.c.b16 %v94, %v93
  %v110 = vpack.c.b16 %v96, %v95
  %v111 = vpack.c.b16 %v98, %v97
  %v112 = vpack.c.b16 %v100, %v99
  %vm125 = vcmask 523264
  %v127 = vsel %vm125, %v51, 0
  %129 = vmatprep.subr.bf16.mxu0 0
  %130 = vmatpush1.bf16.msra.mxu0 %v101
  %131 = vmatprep.subr.bf16.mxu0 0
  %132 = vmatpush1.bf16.msra.mxu0 %v102
  %133 = vmatprep.subr.bf16.mxu0 0
  %134 = vmatpush1.bf16.msra.mxu0 %v103
  %135 = vmatprep.subr.bf16.mxu0 0
  %136 = vmatpush1.bf16.msra.mxu0 %v104
  %137 = vmatprep.subr.bf16.mxu0 0
  %138 = vmatpush1.bf16.msra.mxu0 %v105
  %139 = vmatprep.subr.bf16.mxu0 0
  %140 = vmatpush1.bf16.msra.mxu0 %v106
  %141 = vmatprep.subr.bf16.mxu0 0
  %142 = vmatpush1.bf16.msra.mxu0 %v107
  %143 = vmatprep.subr.bf16.mxu0 0
  %144 = vmatpush1.bf16.msra.mxu0 %v108
  %145 = vmatprep.subr.bf16.mxu0 0
  %146 = vmatpush1.bf16.msra.mxu0 %v109
  %147 = vmatprep.subr.bf16.mxu0 0
  %148 = vmatpush1.bf16.msra.mxu0 %v110
  %149 = vmatprep.subr.bf16.mxu0 0
  %150 = vmatpush1.bf16.msra.mxu0 %v111
  %151 = vmatprep.subr.bf16.mxu0 0
  %152 = vmatpush1.bf16.msra.mxu0 %v112
  %153 = vmatprep.subr.bf16.mxu0 0
  %154 = vmatpush1.bf16.msra.mxu0 0
  %155 = vmatprep.subr.bf16.mxu0 0
  %156 = vmatpush1.bf16.msra.mxu0 0
  %157 = vmatprep.subr.bf16.mxu0 0
  %158 = vmatpush1.bf16.msra.mxu0 0
  %159 = vmatprep.subr.bf16.mxu0 0
  %160 = vmatpush1.bf16.msra.mxu0 0
  %161 = vmatprep.mubr.bf16.mxu0 %v127
  %162 = vmatmul.mubr.bf16.gmra.mrb[0].mxu0 %v50
  %v163 = vpop.f32.mrb[0].mxu0
  %v164 = vadd.f32 %v45, %v163
  %v165 = vpop.f32.mrb[0].mxu0
  %v166 = vpop.f32.mrb[0].mxu0
  %v167 = vpop.f32.mrb[0].mxu0
  %168 = vdwg.mxu0
  %v169 = vpack.c.bf16 %v164, %v164
  %vm170 = vcmask 257024
  %171 = vst.msk [vmem:[%s3] sm:$0xf] %vm170, %v169
  // Predicated region
  $region14: #{vit_classifier_forward.13} parent=0 // pred_check
    _
  $region15: #{vit_classifier_forward.13} parent=0 // pred_check_branch
    %173 = sbr.rel (0) target = $region17
  $region16: #{vit_classifier_forward.13} parent=0 // pred_region
    _
  $region17: #{vit_classifier_forward.13} parent=0 // pred_fallthru
    _
  // Predicated region
  $region18: #{vit_classifier_forward.13} parent=0 // pred_check
    _
  $region19: #{vit_classifier_forward.13} parent=0 // pred_check_branch
    %175 = sbr.rel (0) target = $region21
  $region20: #{vit_classifier_forward.13} parent=0 // pred_region
    _
  $region21: #{vit_classifier_forward.13} parent=0 // pred_fallthru
    _

// kernel: vit_classifier_forward.15
$region0: #{vit_classifier_forward.15}
  #allocation0 [shape = 'u32[]', space=smem, size = 0x4, offset = 0x4, fixed_abs, tag = 'smem constant byte address 0x4 - core index']
  #allocation1 [shape = 'u32[144,128]{1,0:T(1,128)}', space=vmem, size = 0x12000, scoped, tag = 'internal scratch']
  %s0 = inlined_call_operand.vmem [shape: bf16[10,32], index: 0, kind: input, shape index: {}]
  %s1 = inlined_call_operand.vmem [shape: f32[1,32], index: 1, kind: input, shape index: {}]
  %s2 = inlined_call_operand.vmem [shape: f32[1,32], index: 2, kind: input, shape index: {}]
  %s3 = inlined_call_operand.vmem [shape: bf16[32,96], index: 3, kind: input, shape index: {}]
  %s4 = inlined_call_operand.vmem [shape: f32[1,96], index: 4, kind: input, shape index: {}]
  %s5 = inlined_call_operand.vmem [shape: bf16[10,96], index: 5, kind: output, shape index: {}]
  %s6 = sld [smem:[#allocation0]]
  $region30: #{vit_classifier_forward.15} parent=0
    _
  %s8 = ssub.s32 1, %s6
  %s9 = scalar_select 0, %s8, %s6
  // Predicated region
  $region2: #{vit_classifier_forward.15} parent=0 // pred_check
    _
  $region3: #{vit_classifier_forward.15} parent=0 // pred_check_branch
    %11 = sbr.rel (0) target = $region5
  $region4: #{vit_classifier_forward.15} parent=0 // pred_region
    _
  $region5: #{vit_classifier_forward.15} parent=0 // pred_fallthru
    _
  // Predicated region
  $region6: #{vit_classifier_forward.15} parent=0 // pred_check
    _
  $region7: #{vit_classifier_forward.15} parent=0 // pred_check_branch
    %13 = sbr.rel (0) target = $region9
  $region8: #{vit_classifier_forward.15} parent=0 // pred_region
    _
  $region9: #{vit_classifier_forward.15} parent=0 // pred_fallthru
    _
  // Predicated region
  $region10: #{vit_classifier_forward.15} parent=0 // pred_check
    _
  $region11: #{vit_classifier_forward.15} parent=0 // pred_check_branch
    %15 = sbr.rel (0) target = $region13
  $region12: #{vit_classifier_forward.15} parent=0 // pred_region
    _
  $region13: #{vit_classifier_forward.15} parent=0 // pred_fallthru
    _
  // Predicated region
  $region14: #{vit_classifier_forward.15} parent=0 // pred_check
    _
  $region15: #{vit_classifier_forward.15} parent=0 // pred_check_branch
    %17 = sbr.rel (0) target = $region17
  $region16: #{vit_classifier_forward.15} parent=0 // pred_region
    _
  $region17: #{vit_classifier_forward.15} parent=0 // pred_fallthru
    _
  // Predicated region
  $region18: #{vit_classifier_forward.15} parent=0 // pred_check
    _
  $region19: #{vit_classifier_forward.15} parent=0 // pred_check_branch
    %19 = sbr.rel (0) target = $region21
  $region20: #{vit_classifier_forward.15} parent=0 // pred_region
    _
  $region21: #{vit_classifier_forward.15} parent=0 // pred_fallthru
    _
  %v21 = vld [vmem:[%s0] sm:$0xf]
  %v22 = vld [vmem:[%s0 + $0x4] sm:$0x1]
  %v23 = vunpack.c.l.bf16 %v21
  %v24 = vunpack.c.l.bf16 %v22
  %vm25 = vcmask 261120
  %v26 = vsel %vm25, %v23, 0.0
  %27 = vadd.xlane.f32.xlu0 %v26
  %v28 = vpop.xlane.xlu0 %27
  %vm29 = vcmask 254976
  %v30 = vsel %vm29, %v24, 0.0
  %31 = vadd.xlane.f32.xlu0 %v30
  %v32 = vpop.xlane.xlu0 %31
  %v33 = vrcp.pop 32.0
  %v34 = vmul.f32 %v28, %v33
  %v35 = vmul.f32 %v32, %v33
  %v36 = vsub.f32 %v23, %v34
  %v37 = vsub.f32 %v24, %v35
  %v38 = vmul.f32 %v36, %v36
  %v39 = vmul.f32 %v37, %v37
  %v40 = vsel %vm25, %v38, 0.0
  %41 = vadd.xlane.f32.xlu0 %v40
  %v42 = vpop.xlane.xlu0 %41
  %v43 = vsel %vm29, %v39, 0.0
  %44 = vadd.xlane.f32.xlu0 %v43
  %v45 = vpop.xlane.xlu0 %44
  %v46 = vmul.f32 %v42, %v33
  %v47 = vmul.f32 %v45, %v33
  %v48 = vadd.f32 %v46, 1e-05
  %v49 = vadd.f32 %v47, 1e-05
  %v50 = vrsqrt.pop %v48
  %v51 = vrsqrt.pop %v49
  %v52 = vmul.f32 %v36, %v50
  %v53 = vmul.f32 %v37, %v51
  %v54 = vld [vmem:[%s1] sm:$0x1]
  %v56 = vlaneseq
  %v57 = vshrl.u32 %v56, 7
  %v58 = vsub.s32 0, %v57
  %v59 = vrot.slane %v54, %v58
  %v61 = vmul.f32 %v52, %v59
  %v62 = vmul.f32 %v53, %v59
  %v63 = vld [vmem:[%s2] sm:$0x1]
  %v65 = vlaneseq
  %v66 = vshrl.u32 %v65, 7
  %v67 = vsub.s32 0, %v66
  %v68 = vrot.slane %v63, %v67
  %v70 = vadd.f32 %v61, %v68
  %v71 = vadd.f32 %v62, %v68
  %v72 = vpack.c.bf16 %v71, %v70
  %v73 = vld [vmem:[%s3] sm:$0xf]
  %v74 = vld [vmem:[%s3 + $0x4] sm:$0xf]
  %v75 = vld [vmem:[%s3 + $0x8] sm:$0xf]
  %v76 = vld [vmem:[%s3 + $0xc] sm:$0xf]
  %v77 = vld [vmem:[%s4] sm:$0x1]
  %v79 = vlaneseq
  %v80 = vshrl.u32 %v79, 7
  %v81 = vsub.s32 0, %v80
  %v82 = vrot.slane %v77, %v81
  %v88 = vunpack.c.l.b16 %v73
  %v89 = vunpack.c.l.b16 %v74
  %v90 = vunpack.c.l.b16 %v75
  %v91 = vunpack.c.l.b16 %v76
  %v92 = vpack.c.b16 %v89, %v88
  %v93 = vpack.c.b16 %v91, %v90
  %v97 = vsel %vm25, %v72, 0
  %99 = vmatprep.subr.bf16.mxu0 0
  %100 = vmatpush1.bf16.msra.mxu0 %v92
  %101 = vmatprep.subr.bf16.mxu0 0
  %102 = vmatpush1.bf16.msra.mxu0 %v93
  %103 = vmatprep.subr.bf16.mxu0 0
  %104 = vmatpush1.bf16.msra.mxu0 0
  %105 = vmatprep.subr.bf16.mxu0 0
  %106 = vmatpush1.bf16.msra.mxu0 0
  %107 = vmatprep.subr.bf16.mxu0 0
  %108 = vmatpush1.bf16.msra.mxu0 0
  %109 = vmatprep.subr.bf16.mxu0 0
  %110 = vmatpush1.bf16.msra.mxu0 0
  %111 = vmatprep.subr.bf16.mxu0 0
  %112 = vmatpush1.bf16.msra.mxu0 0
  %113 = vmatprep.subr.bf16.mxu0 0
  %114 = vmatpush1.bf16.msra.mxu0 0
  %115 = vmatprep.subr.bf16.mxu0 0
  %116 = vmatpush1.bf16.msra.mxu0 0
  %117 = vmatprep.subr.bf16.mxu0 0
  %118 = vmatpush1.bf16.msra.mxu0 0
  %119 = vmatprep.subr.bf16.mxu0 0
  %120 = vmatpush1.bf16.msra.mxu0 0
  %121 = vmatprep.subr.bf16.mxu0 0
  %122 = vmatpush1.bf16.msra.mxu0 0
  %123 = vmatprep.subr.bf16.mxu0 0
  %124 = vmatpush1.bf16.msra.mxu0 0
  %125 = vmatprep.subr.bf16.mxu0 0
  %126 = vmatpush1.bf16.msra.mxu0 0
  %127 = vmatprep.subr.bf16.mxu0 0
  %128 = vmatpush1.bf16.msra.mxu0 0
  %129 = vmatprep.subr.bf16.mxu0 0
  %130 = vmatpush1.bf16.msra.mxu0 0
  %131 = vmatprep.mubr.bf16.mxu0 0
  %132 = vmatmul.mubr.bf16.gmra.mrb[0].mxu0 %v97
  %v133 = vpop.f32.mrb[0].mxu0
  %v134 = vadd.f32 %v82, %v133
  %v135 = vpop.f32.mrb[0].mxu0
  %v136 = vpop.f32.mrb[0].mxu0
  %v137 = vadd.f32 %v82, %v136
  %v138 = vpop.f32.mrb[0].mxu0
  %139 = vdwg.mxu0
  %v140 = vpack.c.bf16 %v137, %v134
  %v142 = vunpack.c.l.b16 %v140
  %v143 = vunpack.c.h.b16 %v140
  %v144 = vpack.c.b16 %v142, %v142
  %v145 = vpack.c.b16 %v143, %v143
  %vm148 = vcmask 781312
  %149 = vst.msk [vmem:[%s5] sm:$0xf] %vm148, %v144
  %vm150 = vcmask 778240
  %151 = vst.msk [vmem:[%s5 + $0x4] sm:$0x1] %vm150, %v145
  // Predicated region
  $region22: #{vit_classifier_forward.15} parent=0 // pred_check
    _
  $region23: #{vit_classifier_forward.15} parent=0 // pred_check_branch
    %153 = sbr.rel (0) target = $region25
  $region24: #{vit_classifier_forward.15} parent=0 // pred_region
    _
  $region25: #{vit_classifier_forward.15} parent=0 // pred_fallthru
    _
  // Predicated region
  $region26: #{vit_classifier_forward.15} parent=0 // pred_check
    _
  $region27: #{vit_classifier_forward.15} parent=0 // pred_check_branch
    %155 = sbr.rel (0) target = $region29
  $region28: #{vit_classifier_forward.15} parent=0 // pred_region
    _
  $region29: #{vit_classifier_forward.15} parent=0 // pred_fallthru
    _

// kernel: vit_classifier_forward.16
$region0: #{vit_classifier_forward.16}
  #allocation0 [shape = 'u32[]', space=smem, size = 0x4, offset = 0x4, fixed_abs, tag = 'smem constant byte address 0x4 - core index']
  #allocation1 [shape = 'u32[144,128]{1,0:T(1,128)}', space=vmem, size = 0x12000, scoped, tag = 'internal scratch']
  %s0 = inlined_call_operand.vmem [shape: bf16[2,5,32], index: 0, kind: input, shape index: {}]
  %s1 = inlined_call_operand.vmem [shape: bf16[2,5,32], index: 1, kind: input, shape index: {}]
  %s2 = inlined_call_operand.vmem [shape: bf16[2,5,32], index: 2, kind: input, shape index: {}]
  %s3 = inlined_call_operand.vmem [shape: bf16[2,5,32], index: 3, kind: output, shape index: {}]
  %s4 = sld [smem:[#allocation0]]
  $region45: #{vit_classifier_forward.16} parent=0
    _
  %s6 = ssub.s32 1, %s4
  %s7 = scalar_select 0, %s6, %s4
  loop: start=0, step=1, limit=4
  $region2: #{vit_classifier_forward.16} parent=0 // loop_pre_header
    _
  $region3: #{vit_classifier_forward.16} parent=0 // loop_header
    %s9 = sphi 0, %s13
    %p10 = scmp.ge.s32.totalorder %s9, 4
    %s19 = sphi 0, %s21
    %s22 = sphi 0, %s19
    %s23 = sphi 0, %s22
    %s39 = sphi 0, %s23
    %s45 = sphi 0, %s47
    %s48 = sphi 0, %s45
    %s49 = sphi 0, %s48
    %s65 = sphi 0, %s49
    %s71 = sphi 0, %s73
    %s74 = sphi 0, %s71
    %s75 = sphi 0, %s74
    %s91 = sphi 0, %s75
    %s97 = sphi 0, %s99
    %s100 = sphi 0, %s97
    %s101 = sphi 0, %s100
    %s117 = sphi 0, %s101
  $region4: #{vit_classifier_forward.16} parent=0 // loop_header_branch
    %12 = sbr.rel (%p10) target = $region8
  $region5: #{vit_classifier_forward.16} parent=0 // loop_body
    %s14 = ssub.s32 %s9, 1
    %s15 = ssub.s32 %s9, 2
    %s16 = sadd.s32 %s9, 1
    %s17 = ssub.s32 %s9, %s16
    %p18 = scmp.eq.s32.totalorder %s17, 0
    %s20 = sadd.s32 %s19, 1
    %s21 = scalar_select %p18, %s19, %s20
    %p24 = pneg %p18
    %p25 = scmp.eq.s32.totalorder %s9, 1
    %p26 = por %p24, %p25
    %p27 = scmp.ne.s32.totalorder %s19, %s22
    %p28 = scmp.eq.s32.totalorder %s9, 0
    %p29 = por %p27, %p28
    %p30 = scmp.ne.s32.totalorder %s19, %s22
    %p31 = scmp.eq.s32.totalorder %s14, 1
    %p32 = por %p30, %p31
    %p33 = scmp.ne.s32.totalorder %s22, %s23
    %p34 = scmp.eq.s32.totalorder %s14, 0
    %p35 = por %p33, %p34
    %p36 = scmp.ne.s32.totalorder %s22, %s23
    %p37 = scmp.eq.s32.totalorder %s15, 1
    %p38 = por %p36, %p37
    %p40 = scmp.ne.s32.totalorder %s23, %s39
    %p41 = scmp.eq.s32.totalorder %s15, 0
    %p42 = por %p40, %p41
    %s43 = ssub.s32 %s9, %s16
    %p44 = scmp.eq.s32.totalorder %s43, 0
    %s46 = sadd.s32 %s45, 1
    %s47 = scalar_select %p44, %s45, %s46
    %p50 = pneg %p44
    %p51 = scmp.eq.s32.totalorder %s9, 1
    %p52 = por %p50, %p51
    %p53 = scmp.ne.s32.totalorder %s45, %s48
    %p54 = scmp.eq.s32.totalorder %s9, 0
    %p55 = por %p53, %p54
    %p56 = scmp.ne.s32.totalorder %s45, %s48
    %p57 = scmp.eq.s32.totalorder %s14, 1
    %p58 = por %p56, %p57
    %p59 = scmp.ne.s32.totalorder %s48, %s49
    %p60 = scmp.eq.s32.totalorder %s14, 0
    %p61 = por %p59, %p60
    %p62 = scmp.ne.s32.totalorder %s48, %s49
    %p63 = scmp.eq.s32.totalorder %s15, 1
    %p64 = por %p62, %p63
    %p66 = scmp.ne.s32.totalorder %s49, %s65
    %p67 = scmp.eq.s32.totalorder %s15, 0
    %p68 = por %p66, %p67
    %s69 = ssub.s32 %s9, %s16
    %p70 = scmp.eq.s32.totalorder %s69, 0
    %s72 = sadd.s32 %s71, 1
    %s73 = scalar_select %p70, %s71, %s72
    %p76 = pneg %p70
    %p77 = scmp.eq.s32.totalorder %s9, 1
    %p78 = por %p76, %p77
    %p79 = scmp.ne.s32.totalorder %s71, %s74
    %p80 = scmp.eq.s32.totalorder %s9, 0
    %p81 = por %p79, %p80
    %p82 = scmp.ne.s32.totalorder %s71, %s74
    %p83 = scmp.eq.s32.totalorder %s14, 1
    %p84 = por %p82, %p83
    %p85 = scmp.ne.s32.totalorder %s74, %s75
    %p86 = scmp.eq.s32.totalorder %s14, 0
    %p87 = por %p85, %p86
    %p88 = scmp.ne.s32.totalorder %s74, %s75
    %p89 = scmp.eq.s32.totalorder %s15, 1
    %p90 = por %p88, %p89
    %p92 = scmp.ne.s32.totalorder %s75, %s91
    %p93 = scmp.eq.s32.totalorder %s15, 0
    %p94 = por %p92, %p93
    %s95 = ssub.s32 %s9, %s16
    %p96 = scmp.eq.s32.totalorder %s95, 0
    %s98 = sadd.s32 %s97, 1
    %s99 = scalar_select %p96, %s97, %s98
    %p102 = pneg %p96
    %p103 = scmp.eq.s32.totalorder %s9, 1
    %p104 = por %p102, %p103
    %p105 = scmp.ne.s32.totalorder %s97, %s100
    %p106 = scmp.eq.s32.totalorder %s9, 0
    %p107 = por %p105, %p106
    %p108 = scmp.ne.s32.totalorder %s97, %s100
    %p109 = scmp.eq.s32.totalorder %s14, 1
    %p110 = por %p108, %p109
    %p111 = scmp.ne.s32.totalorder %s100, %s101
    %p112 = scmp.eq.s32.totalorder %s14, 0
    %p113 = por %p111, %p112
    %p114 = scmp.ne.s32.totalorder %s100, %s101
    %p115 = scmp.eq.s32.totalorder %s15, 1
    %p116 = por %p114, %p115
    %p118 = scmp.ne.s32.totalorder %s101, %s117
    %p119 = scmp.eq.s32.totalorder %s15, 0
    %p120 = por %p118, %p119
    %p121 = scmp.le.s32.totalorder 1, %s9
    %p122 = scmp.lt.s32.totalorder %s9, 3
    %p123 = pnand %p121, %p122
    %p124 = pneg %p123
    // Predicated region
    $region9: #{vit_classifier_forward.16} parent=5 // pred_check
      _
    $region10: #{vit_classifier_forward.16} parent=5 // pred_check_branch
      %126 = sbr.rel (%p123) target = $region12
    $region11: #{vit_classifier_forward.16} parent=5 // pred_region
      %s127 = ssub.s32 %s9, 1
    $region12: #{vit_classifier_forward.16} parent=5 // pred_fallthru
      _
    %p128 = scmp.lt.s32.totalorder %s9, 2
    // Predicated region
    $region13: #{vit_classifier_forward.16} parent=5 // pred_check
      %p129 = pneg %p128
    $region14: #{vit_classifier_forward.16} parent=5 // pred_check_branch
      %131 = sbr.rel (%p129) target = $region16
    $region15: #{vit_classifier_forward.16} parent=5 // pred_region
      // Predicated region
      $region17: #{vit_classifier_forward.16} parent=15 // pred_check
        %p132 = pneg %p29
      $region18: #{vit_classifier_forward.16} parent=15 // pred_check_branch
        %134 = sbr.rel (%p132) target = $region20
      $region19: #{vit_classifier_forward.16} parent=15 // pred_region
        %p135 = scmp.lt.s32.totalorder %s9, 1
        %s136 = scalar_select %p135, %s9, 1
        %s137 = smul.addr %s136, 4
        %s138 = scalar_lea.vmem %s0, %s137
      $region20: #{vit_classifier_forward.16} parent=15 // pred_fallthru
        _
      // Predicated region
      $region21: #{vit_classifier_forward.16} parent=15 // pred_check
        %p139 = pneg %p55
      $region22: #{vit_classifier_forward.16} parent=15 // pred_check_branch
        %141 = sbr.rel (%p139) target = $region24
      $region23: #{vit_classifier_forward.16} parent=15 // pred_region
        %p142 = scmp.lt.s32.totalorder %s9, 1
        %s143 = scalar_select %p142, %s9, 1
        %s144 = smul.addr %s143, 4
        %s145 = scalar_lea.vmem %s1, %s144
      $region24: #{vit_classifier_forward.16} parent=15 // pred_fallthru
        _
      // Predicated region
      $region25: #{vit_classifier_forward.16} parent=15 // pred_check
        %p146 = pneg %p81
      $region26: #{vit_classifier_forward.16} parent=15 // pred_check_branch
        %148 = sbr.rel (%p146) target = $region28
      $region27: #{vit_classifier_forward.16} parent=15 // pred_region
        %p149 = scmp.lt.s32.totalorder %s9, 1
        %s150 = scalar_select %p149, %s9, 1
        %s151 = smul.addr %s150, 4
        %s152 = scalar_lea.vmem %s2, %s151
      $region28: #{vit_classifier_forward.16} parent=15 // pred_fallthru
        _
    $region16: #{vit_classifier_forward.16} parent=5 // pred_fallthru
      _
    %p153 = scmp.le.s32.totalorder 1, %s9
    %p154 = scmp.lt.s32.totalorder %s9, 3
    %p155 = pnand %p153, %p154
    %p156 = pneg %p155
    // Predicated region
    $region29: #{vit_classifier_forward.16} parent=5 // pred_check
      _
    $region30: #{vit_classifier_forward.16} parent=5 // pred_check_branch
      %158 = sbr.rel (%p155) target = $region32
    $region31: #{vit_classifier_forward.16} parent=5 // pred_region
      %s159 = ssub.s32 %s9, 1
      %p160 = scmp.lt.s32.totalorder %s14, 1
      %s161 = scalar_select %p160, %s14, 1
      %s162 = smul.addr %s161, 4
      %s163 = scalar_lea.vmem %s0, %s162
      %p164 = pneg %p35
      %p165 = pneg %p32
      %p166 = scmp.lt.s32.totalorder %s14, 1
      %s167 = scalar_select %p166, %s14, 1
      %s168 = smul.addr %s167, 4
      %s169 = scalar_lea.vmem %s1, %s168
      %p170 = pneg %p61
      %p171 = pneg %p58
      %p172 = scmp.lt.s32.totalorder %s14, 1
      %s173 = scalar_select %p172, %s14, 1
      %s174 = smul.addr %s173, 4
      %s175 = scalar_lea.vmem %s2, %s174
      %p176 = pneg %p87
      %p177 = pneg %p84
      %p178 = pneg %p113
      %p179 = pneg %p110
      %p180 = scmp.lt.s32.totalorder %s14, 1
      %s181 = scalar_select %p180, %s14, 1
      %s182 = smul.addr %s181, 4
      %s183 = scalar_lea.vmem %s3, %s182
      %p184 = scmp.lt.s32.totalorder %s14, 1
      %s185 = scalar_select %p184, %s14, 1
      %s186 = smul.addr %s185, 4
      %s187 = scalar_lea.vmem %s0, %s186
      %p188 = scmp.lt.s32.totalorder %s14, 1
      %s189 = scalar_select %p188, %s14, 1
      %s190 = smul.addr %s189, 4
      %s191 = scalar_lea.vmem %s1, %s190
      %p192 = scmp.lt.s32.totalorder %s14, 1
      %s193 = scalar_select %p192, %s14, 1
      %s194 = smul.addr %s193, 4
      %s195 = scalar_lea.vmem %s2, %s194
      %p196 = scmp.lt.s32.totalorder %s14, 1
      %s197 = scalar_select %p196, %s14, 1
      %s198 = smul.addr %s197, 4
      %s199 = scalar_lea.vmem %s3, %s198
      %v202 = vld [vmem:[%s187] sm:$0x7]
      %v203 = vmul.bf16 %v202, 1052065461
      %v204 = vld [vmem:[%s191] sm:$0x7]
      %v205 = vld [vmem:[%s195] sm:$0x7]
      %vm206 = vcmask 64512
      %v208 = vsel %vm206, %v203, 0
      %v211 = vsel %vm206, %v204, 0
      %213 = vmatprep.subr.bf16.mxu0 0
      %214 = vmatpush1.bf16.xpose.msra.mxu0 %v211
      %215 = vmatprep.subr.bf16.mxu0 0
      %216 = vmatpush1.bf16.xpose.msra.mxu0 0
      %217 = vmatprep.subr.bf16.mxu0 0
      %218 = vmatpush1.bf16.xpose.msra.mxu0 0
      %219 = vmatprep.subr.bf16.mxu0 0
      %220 = vmatpush1.bf16.xpose.msra.mxu0 0
      %221 = vmatprep.subr.bf16.mxu0 0
      %222 = vmatpush1.bf16.xpose.msra.mxu0 0
      %223 = vmatprep.subr.bf16.mxu0 0
      %224 = vmatpush1.bf16.xpose.msra.mxu0 0
      %225 = vmatprep.subr.bf16.mxu0 0
      %226 = vmatpush1.bf16.xpose.msra.mxu0 0
      %227 = vmatprep.subr.bf16.mxu0 0
      %228 = vmatpush1.bf16.xpose.msra.mxu0 0
      %229 = vmatprep.subr.bf16.mxu0 0
      %230 = vmatpush1.bf16.xpose.msra.mxu0 0
      %231 = vmatprep.subr.bf16.mxu0 0
      %232 = vmatpush1.bf16.xpose.msra.mxu0 0
      %233 = vmatprep.subr.bf16.mxu0 0
      %234 = vmatpush1.bf16.xpose.msra.mxu0 0
      %235 = vmatprep.subr.bf16.mxu0 0
      %236 = vmatpush1.bf16.xpose.msra.mxu0 0
      %237 = vmatprep.subr.bf16.mxu0 0
      %238 = vmatpush1.bf16.xpose.msra.mxu0 0
      %239 = vmatprep.subr.bf16.mxu0 0
      %240 = vmatpush1.bf16.xpose.msra.mxu0 0
      %241 = vmatprep.subr.bf16.mxu0 0
      %242 = vmatpush1.bf16.xpose.msra.mxu0 0
      %243 = vmatprep.subr.bf16.mxu0 0
      %244 = vmatpush1.bf16.xpose.msra.mxu0 0
      %245 = vmatprep.mubr.bf16.mxu0 0
      %246 = vmatmul.mubr.bf16.gmra.mrb[0].mxu0 %v208
      %v247 = vpop.f32.mrb[0].mxu0
      %v248 = vadd.f32 0.0, %v247
      %v249 = vpop.f32.mrb[0].mxu0
      %v250 = vpop.f32.mrb[0].mxu0
      %v251 = vpop.f32.mrb[0].mxu0
      %252 = vdwg.mxu0
      %vm253 = vcmask 36864
      %v254 = vsel %vm253, %v248, -inf
      %255 = vmax.xlane.f32.xlu0 %v254
      %v256 = vpop.xlane.xlu0 %255
      %v257 = vsub.f32 %v248, %v256
      %v258 = vmul.f32 %v257, 1.442695
      %v259 = vpow.pop %v258
      %v260 = vsel %vm253, %v259, 0.0
      %261 = vadd.xlane.f32.xlu0 %v260
      %v262 = vpop.xlane.xlu0 %261
      %v263 = vrcp.pop %v262
      %v264 = vmul.f32 %v259, %v263
      %v265 = vpack.c.bf16 %v264, %v264
      %vm266 = vcmask 39936
      %v268 = vsel %vm266, %v265, 0
      %vm270 = vcmask 1041408
      %vm271 = vcmask 1042432
      %v272 = vsel %vm270, 4294967295, 65535
      %v273 = vsel %vm271, %v272, 0
      %v275 = vand.u32 %v205, %v273
      %277 = vmatprep.subr.bf16.mxu0 0
      %278 = vmatpush1.bf16.msra.mxu0 %v275
      %279 = vmatprep.subr.bf16.mxu0 0
      %280 = vmatpush1.bf16.msra.mxu0 0
      %281 = vmatprep.subr.bf16.mxu0 0
      %282 = vmatpush1.bf16.msra.mxu0 0
      %283 = vmatprep.subr.bf16.mxu0 0
      %284 = vmatpush1.bf16.msra.mxu0 0
      %285 = vmatprep.subr.bf16.mxu0 0
      %286 = vmatpush1.bf16.msra.mxu0 0
      %287 = vmatprep.subr.bf16.mxu0 0
      %288 = vmatpush1.bf16.msra.mxu0 0
      %289 = vmatprep.subr.bf16.mxu0 0
      %290 = vmatpush1.bf16.msra.mxu0 0
      %291 = vmatprep.subr.bf16.mxu0 0
      %292 = vmatpush1.bf16.msra.mxu0 0
      %293 = vmatprep.subr.bf16.mxu0 0
      %294 = vmatpush1.bf16.msra.mxu0 0
      %295 = vmatprep.subr.bf16.mxu0 0
      %296 = vmatpush1.bf16.msra.mxu0 0
      %297 = vmatprep.subr.bf16.mxu0 0
      %298 = vmatpush1.bf16.msra.mxu0 0
      %299 = vmatprep.subr.bf16.mxu0 0
      %300 = vmatpush1.bf16.msra.mxu0 0
      %301 = vmatprep.subr.bf16.mxu0 0
      %302 = vmatpush1.bf16.msra.mxu0 0
      %303 = vmatprep.subr.bf16.mxu0 0
      %304 = vmatpush1.bf16.msra.mxu0 0
      %305 = vmatprep.subr.bf16.mxu0 0
      %306 = vmatpush1.bf16.msra.mxu0 0
      %307 = vmatprep.subr.bf16.mxu0 0
      %308 = vmatpush1.bf16.msra.mxu0 0
      %309 = vmatprep.mubr.bf16.mxu0 0
      %310 = vmatmul.mubr.bf16.gmra.mrb[0].mxu0 %v268
      %v311 = vpop.f32.mrb[0].mxu0
      %v312 = vadd.f32 0.0, %v311
      %v313 = vpop.f32.mrb[0].mxu0
      %v314 = vpop.f32.mrb[0].mxu0
      %v315 = vpop.f32.mrb[0].mxu0
      %316 = vdwg.mxu0
      %v317 = vpack.c.bf16 %v312, %v312
      %vm318 = vcmask 59392
      %vm319 = vsmask.f32 2304
      %vm320 = vmand %vm318, %vm319
      %v321 = vld [vmem:[%s199] sm:$0x7]
      %v322 = vsel %vm320, %v317, %v321
      %323 = vst [vmem:[%s199] sm:$0x7] %v322
      %v324 = vld [vmem:[%s187] sm:$0x7]
      %v325 = vmul.bf16 %v324, 1052065461
      %v326 = vld [vmem:[%s191] sm:$0x7]
      %v327 = vld [vmem:[%s195] sm:$0x7]
      %v329 = vunpack.c.l.b16 %v325
      %v330 = vpack.c.b16 %v329, %v329
      %331 = vrot.lane.b32.xlu0 %v330, 120
      %v332 = vpop.permute.xlu0 %331
      %v334 = vunpack.c.l.b16 %v326
      %v335 = vpack.c.b16 %v334, %v334
      %336 = vrot.lane.b32.xlu0 %v335, 120
      %v337 = vpop.permute.xlu0 %336
      %v339 = vsel %vm206, %v332, 0
      %v342 = vsel %vm206, %v337, 0
      %344 = vmatprep.subr.bf16.mxu0 0
      %345 = vmatpush1.bf16.xpose.msra.mxu0 %v342
      %346 = vmatprep.subr.bf16.mxu0 0
      %347 = vmatpush1.bf16.xpose.msra.mxu0 0
      %348 = vmatprep.subr.bf16.mxu0 0
      %349 = vmatpush1.bf16.xpose.msra.mxu0 0
      %350 = vmatprep.subr.bf16.mxu0 0
      %351 = vmatpush1.bf16.xpose.msra.mxu0 0
      %352 = vmatprep.subr.bf16.mxu0 0
      %353 = vmatpush1.bf16.xpose.msra.mxu0 0
      %354 = vmatprep.subr.bf16.mxu0 0
      %355 = vmatpush1.bf16.xpose.msra.mxu0 0
      %356 = vmatprep.subr.bf16.mxu0 0
      %357 = vmatpush1.bf16.xpose.msra.mxu0 0
      %358 = vmatprep.subr.bf16.mxu0 0
      %359 = vmatpush1.bf16.xpose.msra.mxu0 0
      %360 = vmatprep.subr.bf16.mxu0 0
      %361 = vmatpush1.bf16.xpose.msra.mxu0 0
      %362 = vmatprep.subr.bf16.mxu0 0
      %363 = vmatpush1.bf16.xpose.msra.mxu0 0
      %364 = vmatprep.subr.bf16.mxu0 0
      %365 = vmatpush1.bf16.xpose.msra.mxu0 0
      %366 = vmatprep.subr.bf16.mxu0 0
      %367 = vmatpush1.bf16.xpose.msra.mxu0 0
      %368 = vmatprep.subr.bf16.mxu0 0
      %369 = vmatpush1.bf16.xpose.msra.mxu0 0
      %370 = vmatprep.subr.bf16.mxu0 0
      %371 = vmatpush1.bf16.xpose.msra.mxu0 0
      %372 = vmatprep.subr.bf16.mxu0 0
      %373 = vmatpush1.bf16.xpose.msra.mxu0 0
      %374 = vmatprep.subr.bf16.mxu0 0
      %375 = vmatpush1.bf16.xpose.msra.mxu0 0
      %376 = vmatprep.mubr.bf16.mxu0 0
      %377 = vmatmul.mubr.bf16.gmra.mrb[0].mxu0 %v339
      %v378 = vpop.f32.mrb[0].mxu0
      %v379 = vadd.f32 0.0, %v378
      %v380 = vpop.f32.mrb[0].mxu0
      %v381 = vpop.f32.mrb[0].mxu0
      %v382 = vpop.f32.mrb[0].mxu0
      %383 = vdwg.mxu0
      %v384 = vsel %vm253, %v379, -inf
      %385 = vmax.xlane.f32.xlu0 %v384
      %v386 = vpop.xlane.xlu0 %385
      %v387 = vsub.f32 %v379, %v386
      %v388 = vmul.f32 %v387, 1.442695
      %v389 = vpow.pop %v388
      %v390 = vsel %vm253, %v389, 0.0
      %391 = vadd.xlane.f32.xlu0 %v390
      %v392 = vpop.xlane.xlu0 %391
      %v393 = vrcp.pop %v392
      %v394 = vmul.f32 %v389, %v393
      %v395 = vpack.c.bf16 %v394, %v394
      %v397 = vunpack.c.l.b16 %v327
      %v398 = vpack.c.b16 %v397, %v397
      %399 = vrot.lane.b32.xlu0 %v398, 120
      %v400 = vpop.permute.xlu0 %399
      %v402 = vsel %vm266, %v395, 0
      %v405 = vand.u32 %v400, %v273
      %407 = vmatprep.subr.bf16.mxu0 0
      %408 = vmatpush1.bf16.msra.mxu0 %v405
      %409 = vmatprep.subr.bf16.mxu0 0
      %410 = vmatpush1.bf16.msra.mxu0 0
      %411 = vmatprep.subr.bf16.mxu0 0
      %412 = vmatpush1.bf16.msra.mxu0 0
      %413 = vmatprep.subr.bf16.mxu0 0
      %414 = vmatpush1.bf16.msra.mxu0 0
      %415 = vmatprep.subr.bf16.mxu0 0
      %416 = vmatpush1.bf16.msra.mxu0 0
      %417 = vmatprep.subr.bf16.mxu0 0
      %418 = vmatpush1.bf16.msra.mxu0 0
      %419 = vmatprep.subr.bf16.mxu0 0
      %420 = vmatpush1.bf16.msra.mxu0 0
      %421 = vmatprep.subr.bf16.mxu0 0
      %422 = vmatpush1.bf16.msra.mxu0 0
      %423 = vmatprep.subr.bf16.mxu0 0
      %424 = vmatpush1.bf16.msra.mxu0 0
      %425 = vmatprep.subr.bf16.mxu0 0
      %426 = vmatpush1.bf16.msra.mxu0 0
      %427 = vmatprep.subr.bf16.mxu0 0
      %428 = vmatpush1.bf16.msra.mxu0 0
      %429 = vmatprep.subr.bf16.mxu0 0
      %430 = vmatpush1.bf16.msra.mxu0 0
      %431 = vmatprep.subr.bf16.mxu0 0
      %432 = vmatpush1.bf16.msra.mxu0 0
      %433 = vmatprep.subr.bf16.mxu0 0
      %434 = vmatpush1.bf16.msra.mxu0 0
      %435 = vmatprep.subr.bf16.mxu0 0
      %436 = vmatpush1.bf16.msra.mxu0 0
      %437 = vmatprep.subr.bf16.mxu0 0
      %438 = vmatpush1.bf16.msra.mxu0 0
      %439 = vmatprep.mubr.bf16.mxu0 0
      %440 = vmatmul.mubr.bf16.gmra.mrb[0].mxu0 %v402
      %v441 = vpop.f32.mrb[0].mxu0
      %v442 = vadd.f32 0.0, %v441
      %v443 = vpop.f32.mrb[0].mxu0
      %v444 = vpop.f32.mrb[0].mxu0
      %v445 = vpop.f32.mrb[0].mxu0
      %446 = vdwg.mxu0
      %v447 = vpack.c.bf16 %v442, %v442
      %v449 = vunpack.c.l.b16 %v447
      %v450 = vpack.c.b16 %v449, %v449
      %451 = vrot.lane.b32.xlu0 %v450, 8
      %v452 = vpop.permute.xlu0 %451
      %vm454 = vcmask 124992
      %vm455 = vmand %vm454, %vm319
      %v456 = vld [vmem:[%s199] sm:$0x7]
      %v457 = vsel %vm455, %v452, %v456
      %458 = vst [vmem:[%s199] sm:$0x7] %v457
      %v459 = vld [vmem:[%s187] sm:$0x7]
      %v460 = vmul.bf16 %v459, 1052065461
      %v461 = vld [vmem:[%s191] sm:$0x7]
      %v462 = vld [vmem:[%s195] sm:$0x7]
      %v464 = vunpack.c.l.b16 %v460
      %v465 = vpack.c.b16 %v464, %v464
      %466 = vrot.lane.b32.xlu0 %v465, 112
      %v467 = vpop.permute.xlu0 %466
      %v469 = vunpack.c.l.b16 %v461
      %v470 = vpack.c.b16 %v469, %v469
      %471 = vrot.lane.b32.xlu0 %v470, 112
      %v472 = vpop.permute.xlu0 %471
      %v474 = vsel %vm206, %v467, 0
      %v477 = vsel %vm206, %v472, 0
      %479 = vmatprep.subr.bf16.mxu0 0
      %480 = vmatpush1.bf16.xpose.msra.mxu0 %v477
      %481 = vmatprep.subr.bf16.mxu0 0
      %482 = vmatpush1.bf16.xpose.msra.mxu0 0
      %483 = vmatprep.subr.bf16.mxu0 0
      %484 = vmatpush1.bf16.xpose.msra.mxu0 0
      %485 = vmatprep.subr.bf16.mxu0 0
      %486 = vmatpush1.bf16.xpose.msra.mxu0 0
      %487 = vmatprep.subr.bf16.mxu0 0
      %488 = vmatpush1.bf16.xpose.msra.mxu0 0
      %489 = vmatprep.subr.bf16.mxu0 0
      %490 = vmatpush1.bf16.xpose.msra.mxu0 0
      %491 = vmatprep.subr.bf16.mxu0 0
      %492 = vmatpush1.bf16.xpose.msra.mxu0 0
      %493 = vmatprep.subr.bf16.mxu0 0
      %494 = vmatpush1.bf16.xpose.msra.mxu0 0
      %495 = vmatprep.subr.bf16.mxu0 0
      %496 = vmatpush1.bf16.xpose.msra.mxu0 0
      %497 = vmatprep.subr.bf16.mxu0 0
      %498 = vmatpush1.bf16.xpose.msra.mxu0 0
      %499 = vmatprep.subr.bf16.mxu0 0
      %500 = vmatpush1.bf16.xpose.msra.mxu0 0
      %501 = vmatprep.subr.bf16.mxu0 0
      %502 = vmatpush1.bf16.xpose.msra.mxu0 0
      %503 = vmatprep.subr.bf16.mxu0 0
      %504 = vmatpush1.bf16.xpose.msra.mxu0 0
      %505 = vmatprep.subr.bf16.mxu0 0
      %506 = vmatpush1.bf16.xpose.msra.mxu0 0
      %507 = vmatprep.subr.bf16.mxu0 0
      %508 = vmatpush1.bf16.xpose.msra.mxu0 0
      %509 = vmatprep.subr.bf16.mxu0 0
      %510 = vmatpush1.bf16.xpose.msra.mxu0 0
      %511 = vmatprep.mubr.bf16.mxu0 0
      %512 = vmatmul.mubr.bf16.gmra.mrb[0].mxu0 %v474
      %v513 = vpop.f32.mrb[0].mxu0
      %v514 = vadd.f32 0.0, %v513
      %v515 = vpop.f32.mrb[0].mxu0
      %v516 = vpop.f32.mrb[0].mxu0
      %v517 = vpop.f32.mrb[0].mxu0
      %518 = vdwg.mxu0
      %v519 = vsel %vm253, %v514, -inf
      %520 = vmax.xlane.f32.xlu0 %v519
      %v521 = vpop.xlane.xlu0 %520
      %v522 = vsub.f32 %v514, %v521
      %v523 = vmul.f32 %v522, 1.442695
      %v524 = vpow.pop %v523
      %v525 = vsel %vm253, %v524, 0.0
      %526 = vadd.xlane.f32.xlu0 %v525
      %v527 = vpop.xlane.xlu0 %526
      %v528 = vrcp.pop %v527
      %v529 = vmul.f32 %v524, %v528
      %v530 = vpack.c.bf16 %v529, %v529
      %v532 = vunpack.c.l.b16 %v462
      %v533 = vpack.c.b16 %v532, %v532
      %534 = vrot.lane.b32.xlu0 %v533, 112
      %v535 = vpop.permute.xlu0 %534
      %v537 = vsel %vm266, %v530, 0
      %v540 = vand.u32 %v535, %v273
      %542 = vmatprep.subr.bf16.mxu0 0
      %543 = vmatpush1.bf16.msra.mxu0 %v540
      %544 = vmatprep.subr.bf16.mxu0 0
      %545 = vmatpush1.bf16.msra.mxu0 0
      %546 = vmatprep.subr.bf16.mxu0 0
      %547 = vmatpush1.bf16.msra.mxu0 0
      %548 = vmatprep.subr.bf16.mxu0 0
      %549 = vmatpush1.bf16.msra.mxu0 0
      %550 = vmatprep.subr.bf16.mxu0 0
      %551 = vmatpush1.bf16.msra.mxu0 0
      %552 = vmatprep.subr.bf16.mxu0 0
      %553 = vmatpush1.bf16.msra.mxu0 0
      %554 = vmatprep.subr.bf16.mxu0 0
      %555 = vmatpush1.bf16.msra.mxu0 0
      %556 = vmatprep.subr.bf16.mxu0 0
      %557 = vmatpush1.bf16.msra.mxu0 0
      %558 = vmatprep.subr.bf16.mxu0 0
      %559 = vmatpush1.bf16.msra.mxu0 0
      %560 = vmatprep.subr.bf16.mxu0 0
      %561 = vmatpush1.bf16.msra.mxu0 0
      %562 = vmatprep.subr.bf16.mxu0 0
      %563 = vmatpush1.bf16.msra.mxu0 0
      %564 = vmatprep.subr.bf16.mxu0 0
      %565 = vmatpush1.bf16.msra.mxu0 0
      %566 = vmatprep.subr.bf16.mxu0 0
      %567 = vmatpush1.bf16.msra.mxu0 0
      %568 = vmatprep.subr.bf16.mxu0 0
      %569 = vmatpush1.bf16.msra.mxu0 0
      %570 = vmatprep.subr.bf16.mxu0 0
      %571 = vmatpush1.bf16.msra.mxu0 0
      %572 = vmatprep.subr.bf16.mxu0 0
      %573 = vmatpush1.bf16.msra.mxu0 0
      %574 = vmatprep.mubr.bf16.mxu0 0
      %575 = vmatmul.mubr.bf16.gmra.mrb[0].mxu0 %v537
      %v576 = vpop.f32.mrb[0].mxu0
      %v577 = vadd.f32 0.0, %v576
      %v578 = vpop.f32.mrb[0].mxu0
      %v579 = vpop.f32.mrb[0].mxu0
      %v580 = vpop.f32.mrb[0].mxu0
      %581 = vdwg.mxu0
      %v582 = vpack.c.bf16 %v577, %v577
      %v584 = vunpack.c.l.b16 %v582
      %v585 = vpack.c.b16 %v584, %v584
      %586 = vrot.lane.b32.xlu0 %v585, 16
      %v587 = vpop.permute.xlu0 %586
      %vm589 = vcmask 190592
      %vm590 = vmand %vm589, %vm319
      %v591 = vld [vmem:[%s199] sm:$0x7]
      %v592 = vsel %vm590, %v587, %v591
      %593 = vst [vmem:[%s199] sm:$0x7] %v592
      %v594 = vld [vmem:[%s187] sm:$0x7]
      %v595 = vmul.bf16 %v594, 1052065461
      %v596 = vld [vmem:[%s191] sm:$0x7]
      %v597 = vld [vmem:[%s195] sm:$0x7]
      %v599 = vunpack.c.l.b16 %v595
      %v600 = vpack.c.b16 %v599, %v599
      %601 = vrot.lane.b32.xlu0 %v600, 104
      %v602 = vpop.permute.xlu0 %601
      %v604 = vunpack.c.l.b16 %v596
      %v605 = vpack.c.b16 %v604, %v604
      %606 = vrot.lane.b32.xlu0 %v605, 104
      %v607 = vpop.permute.xlu0 %606
      %v609 = vsel %vm206, %v602, 0
      %v612 = vsel %vm206, %v607, 0
      %614 = vmatprep.subr.bf16.mxu0 0
      %615 = vmatpush1.bf16.xpose.msra.mxu0 %v612
      %616 = vmatprep.subr.bf16.mxu0 0
      %617 = vmatpush1.bf16.xpose.msra.mxu0 0
      %618 = vmatprep.subr.bf16.mxu0 0
      %619 = vmatpush1.bf16.xpose.msra.mxu0 0
      %620 = vmatprep.subr.bf16.mxu0 0
      %621 = vmatpush1.bf16.xpose.msra.mxu0 0
      %622 = vmatprep.subr.bf16.mxu0 0
      %623 = vmatpush1.bf16.xpose.msra.mxu0 0
      %624 = vmatprep.subr.bf16.mxu0 0
      %625 = vmatpush1.bf16.xpose.msra.mxu0 0
      %626 = vmatprep.subr.bf16.mxu0 0
      %627 = vmatpush1.bf16.xpose.msra.mxu0 0
      %628 = vmatprep.subr.bf16.mxu0 0
      %629 = vmatpush1.bf16.xpose.msra.mxu0 0
      %630 = vmatprep.subr.bf16.mxu0 0
      %631 = vmatpush1.bf16.xpose.msra.mxu0 0
      %632 = vmatprep.subr.bf16.mxu0 0
      %633 = vmatpush1.bf16.xpose.msra.mxu0 0
      %634 = vmatprep.subr.bf16.mxu0 0
      %635 = vmatpush1.bf16.xpose.msra.mxu0 0
      %636 = vmatprep.subr.bf16.mxu0 0
      %637 = vmatpush1.bf16.xpose.msra.mxu0 0
      %638 = vmatprep.subr.bf16.mxu0 0
      %639 = vmatpush1.bf16.xpose.msra.mxu0 0
      %640 = vmatprep.subr.bf16.mxu0 0
      %641 = vmatpush1.bf16.xpose.msra.mxu0 0
      %642 = vmatprep.subr.bf16.mxu0 0
      %643 = vmatpush1.bf16.xpose.msra.mxu0 0
      %644 = vmatprep.subr.bf16.mxu0 0
      %645 = vmatpush1.bf16.xpose.msra.mxu0 0
      %646 = vmatprep.mubr.bf16.mxu0 0
      %647 = vmatmul.mubr.bf16.gmra.mrb[0].mxu0 %v609
      %v648 = vpop.f32.mrb[0].mxu0
      %v649 = vadd.f32 0.0, %v648
      %v650 = vpop.f32.mrb[0].mxu0
      %v651 = vpop.f32.mrb[0].mxu0
      %v652 = vpop.f32.mrb[0].mxu0
      %653 = vdwg.mxu0
      %v654 = vsel %vm253, %v649, -inf
      %655 = vmax.xlane.f32.xlu0 %v654
      %v656 = vpop.xlane.xlu0 %655
      %v657 = vsub.f32 %v649, %v656
      %v658 = vmul.f32 %v657, 1.442695
      %v659 = vpow.pop %v658
      %v660 = vsel %vm253, %v659, 0.0
      %661 = vadd.xlane.f32.xlu0 %v660
      %v662 = vpop.xlane.xlu0 %661
      %v663 = vrcp.pop %v662
      %v664 = vmul.f32 %v659, %v663
      %v665 = vpack.c.bf16 %v664, %v664
      %v667 = vunpack.c.l.b16 %v597
      %v668 = vpack.c.b16 %v667, %v667
      %669 = vrot.lane.b32.xlu0 %v668, 104
      %v670 = vpop.permute.xlu0 %669
      %v672 = vsel %vm266, %v665, 0
      %v675 = vand.u32 %v670, %v273
      %677 = vmatprep.subr.bf16.mxu0 0
      %678 = vmatpush1.bf16.msra.mxu0 %v675
      %679 = vmatprep.subr.bf16.mxu0 0
      %680 = vmatpush1.bf16.msra.mxu0 0
      %681 = vmatprep.subr.bf16.mxu0 0
      %682 = vmatpush1.bf16.msra.mxu0 0
      %683 = vmatprep.subr.bf16.mxu0 0
      %684 = vmatpush1.bf16.msra.mxu0 0
      %685 = vmatprep.subr.bf16.mxu0 0
      %686 = vmatpush1.bf16.msra.mxu0 0
      %687 = vmatprep.subr.bf16.mxu0 0
      %688 = vmatpush1.bf16.msra.mxu0 0
      %689 = vmatprep.subr.bf16.mxu0 0
      %690 = vmatpush1.bf16.msra.mxu0 0
      %691 = vmatprep.subr.bf16.mxu0 0
      %692 = vmatpush1.bf16.msra.mxu0 0
      %693 = vmatprep.subr.bf16.mxu0 0
      %694 = vmatpush1.bf16.msra.mxu0 0
      %695 = vmatprep.subr.bf16.mxu0 0
      %696 = vmatpush1.bf16.msra.mxu0 0
      %697 = vmatprep.subr.bf16.mxu0 0
      %698 = vmatpush1.bf16.msra.mxu0 0
      %699 = vmatprep.subr.bf16.mxu0 0
      %700 = vmatpush1.bf16.msra.mxu0 0
      %701 = vmatprep.subr.bf16.mxu0 0
      %702 = vmatpush1.bf16.msra.mxu0 0
      %703 = vmatprep.subr.bf16.mxu0 0
      %704 = vmatpush1.bf16.msra.mxu0 0
      %705 = vmatprep.subr.bf16.mxu0 0
      %706 = vmatpush1.bf16.msra.mxu0 0
      %707 = vmatprep.subr.bf16.mxu0 0
      %708 = vmatpush1.bf16.msra.mxu0 0
      %709 = vmatprep.mubr.bf16.mxu0 0
      %710 = vmatmul.mubr.bf16.gmra.mrb[0].mxu0 %v672
      %v711 = vpop.f32.mrb[0].mxu0
      %v712 = vadd.f32 0.0, %v711
      %v713 = vpop.f32.mrb[0].mxu0
      %v714 = vpop.f32.mrb[0].mxu0
      %v715 = vpop.f32.mrb[0].mxu0
      %716 = vdwg.mxu0
      %v717 = vpack.c.bf16 %v712, %v712
      %v719 = vunpack.c.l.b16 %v717
      %v720 = vpack.c.b16 %v719, %v719
      %721 = vrot.lane.b32.xlu0 %v720, 24
      %v722 = vpop.permute.xlu0 %721
      %vm724 = vcmask 256192
      %vm725 = vmand %vm724, %vm319
      %v726 = vld [vmem:[%s199] sm:$0x7]
      %v727 = vsel %vm725, %v722, %v726
      %728 = vst [vmem:[%s199] sm:$0x7] %v727
      %p729 = scmp.lt.s32.totalorder %s14, 1
      %s730 = scalar_select %p729, %s14, 1
      %s731 = smul.addr %s730, 4
      %s732 = scalar_lea.vmem %s3, %s731
      // Predicated region
      $region33: #{vit_classifier_forward.16} parent=31 // pred_check
        %p733 = pneg %p110
      $region34: #{vit_classifier_forward.16} parent=31 // pred_check_branch
        %735 = sbr.rel (%p733) target = $region36
      $region35: #{vit_classifier_forward.16} parent=31 // pred_region
        _
      $region36: #{vit_classifier_forward.16} parent=31 // pred_fallthru
        _
    $region32: #{vit_classifier_forward.16} parent=5 // pred_fallthru
      _
    %p736 = scmp.le.s32.totalorder 2, %s9
    // Predicated region
    $region37: #{vit_classifier_forward.16} parent=5 // pred_check
      %p737 = pneg %p736
    $region38: #{vit_classifier_forward.16} parent=5 // pred_check_branch
      %739 = sbr.rel (%p737) target = $region40
    $region39: #{vit_classifier_forward.16} parent=5 // pred_region
      %s740 = ssub.s32 %s9, 2
      // Predicated region
      $region41: #{vit_classifier_forward.16} parent=39 // pred_check
        %p741 = pneg %p116
      $region42: #{vit_classifier_forward.16} parent=39 // pred_check_branch
        %743 = sbr.rel (%p741) target = $region44
      $region43: #{vit_classifier_forward.16} parent=39 // pred_region
        %p744 = scmp.lt.s32.totalorder %s15, 1
        %s745 = scalar_select %p744, %s15, 1
        %s746 = smul.addr %s745, 4
        %s747 = scalar_lea.vmem %s3, %s746
      $region44: #{vit_classifier_forward.16} parent=39 // pred_fallthru
        _
    $region40: #{vit_classifier_forward.16} parent=5 // pred_fallthru
      _
  $region6: #{vit_classifier_forward.16} parent=0 // loop_footer
    %s13 = sadd.s32 1, %s9
  $region7: #{vit_classifier_forward.16} parent=0 // loop_footer_branch
    %8 = sbr.rel target = $region3
  $region8: #{vit_classifier_forward.16} parent=0 // loop_exit
    _

// kernel: vit_classifier_forward.17
$region0: #{vit_classifier_forward.17}
  #allocation0 [shape = 'u32[]', space=smem, size = 0x4, offset = 0x4, fixed_abs, tag = 'smem constant byte address 0x4 - core index']
  #allocation1 [shape = 'u32[144,128]{1,0:T(1,128)}', space=vmem, size = 0x12000, scoped, tag = 'internal scratch']
  %s0 = inlined_call_operand.vmem [shape: bf16[10,32], index: 0, kind: input, shape index: {}]
  %s1 = inlined_call_operand.vmem [shape: bf16[32,32], index: 1, kind: input, shape index: {}]
  %s2 = inlined_call_operand.vmem [shape: f32[1,32], index: 2, kind: input, shape index: {}]
  %s3 = inlined_call_operand.vmem [shape: bf16[10,32], index: 3, kind: input, shape index: {}]
  %s4 = inlined_call_operand.vmem [shape: bf16[10,32], index: 4, kind: output, shape index: {}]
  %s5 = sld [smem:[#allocation0]]
  $region26: #{vit_classifier_forward.17} parent=0
    _
  %s7 = ssub.s32 1, %s5
  %s8 = scalar_select 0, %s7, %s5
  // Predicated region
  $region2: #{vit_classifier_forward.17} parent=0 // pred_check
    _
  $region3: #{vit_classifier_forward.17} parent=0 // pred_check_branch
    %10 = sbr.rel (0) target = $region5
  $region4: #{vit_classifier_forward.17} parent=0 // pred_region
    _
  $region5: #{vit_classifier_forward.17} parent=0 // pred_fallthru
    _
  // Predicated region
  $region6: #{vit_classifier_forward.17} parent=0 // pred_check
    _
  $region7: #{vit_classifier_forward.17} parent=0 // pred_check_branch
    %12 = sbr.rel (0) target = $region9
  $region8: #{vit_classifier_forward.17} parent=0 // pred_region
    _
  $region9: #{vit_classifier_forward.17} parent=0 // pred_fallthru
    _
  // Predicated region
  $region10: #{vit_classifier_forward.17} parent=0 // pred_check
    _
  $region11: #{vit_classifier_forward.17} parent=0 // pred_check_branch
    %14 = sbr.rel (0) target = $region13
  $region12: #{vit_classifier_forward.17} parent=0 // pred_region
    _
  $region13: #{vit_classifier_forward.17} parent=0 // pred_fallthru
    _
  // Predicated region
  $region14: #{vit_classifier_forward.17} parent=0 // pred_check
    _
  $region15: #{vit_classifier_forward.17} parent=0 // pred_check_branch
    %16 = sbr.rel (0) target = $region17
  $region16: #{vit_classifier_forward.17} parent=0 // pred_region
    _
  $region17: #{vit_classifier_forward.17} parent=0 // pred_fallthru
    _
  %v18 = vld [vmem:[%s0] sm:$0xf]
  %v19 = vld [vmem:[%s0 + $0x4] sm:$0x1]
  %v20 = vld [vmem:[%s1] sm:$0xf]
  %v21 = vld [vmem:[%s1 + $0x4] sm:$0xf]
  %v22 = vld [vmem:[%s1 + $0x8] sm:$0xf]
  %v23 = vld [vmem:[%s1 + $0xc] sm:$0xf]
  %v24 = vld [vmem:[%s2] sm:$0x1]
  %v26 = vlaneseq
  %v27 = vshrl.u32 %v26, 7
  %v28 = vsub.s32 0, %v27
  %v29 = vrot.slane %v24, %v28
  %v33 = vunpack.c.l.b16 %v18
  %v34 = vunpack.c.l.b16 %v19
  %v35 = vpack.c.b16 %v34, %v33
  %v40 = vunpack.c.l.b16 %v20
  %v41 = vunpack.c.l.b16 %v21
  %v42 = vunpack.c.l.b16 %v22
  %v43 = vunpack.c.l.b16 %v23
  %v44 = vpack.c.b16 %v41, %v40
  %v45 = vpack.c.b16 %v43, %v42
  %vm48 = vcmask 261120
  %v50 = vsel %vm48, %v35, 0
  %52 = vmatprep.subr.bf16.mxu0 0
  %53 = vmatpush1.bf16.msra.mxu0 %v44
  %54 = vmatprep.subr.bf16.mxu0 0
  %55 = vmatpush1.bf16.msra.mxu0 %v45
  %56 = vmatprep.subr.bf16.mxu0 0
  %57 = vmatpush1.bf16.msra.mxu0 0
  %58 = vmatprep.subr.bf16.mxu0 0
  %59 = vmatpush1.bf16.msra.mxu0 0
  %60 = vmatprep.subr.bf16.mxu0 0
  %61 = vmatpush1.bf16.msra.mxu0 0
  %62 = vmatprep.subr.bf16.mxu0 0
  %63 = vmatpush1.bf16.msra.mxu0 0
  %64 = vmatprep.subr.bf16.mxu0 0
  %65 = vmatpush1.bf16.msra.mxu0 0
  %66 = vmatprep.subr.bf16.mxu0 0
  %67 = vmatpush1.bf16.msra.mxu0 0
  %68 = vmatprep.subr.bf16.mxu0 0
  %69 = vmatpush1.bf16.msra.mxu0 0
  %70 = vmatprep.subr.bf16.mxu0 0
  %71 = vmatpush1.bf16.msra.mxu0 0
  %72 = vmatprep.subr.bf16.mxu0 0
  %73 = vmatpush1.bf16.msra.mxu0 0
  %74 = vmatprep.subr.bf16.mxu0 0
  %75 = vmatpush1.bf16.msra.mxu0 0
  %76 = vmatprep.subr.bf16.mxu0 0
  %77 = vmatpush1.bf16.msra.mxu0 0
  %78 = vmatprep.subr.bf16.mxu0 0
  %79 = vmatpush1.bf16.msra.mxu0 0
  %80 = vmatprep.subr.bf16.mxu0 0
  %81 = vmatpush1.bf16.msra.mxu0 0
  %82 = vmatprep.subr.bf16.mxu0 0
  %83 = vmatpush1.bf16.msra.mxu0 0
  %84 = vmatprep.mubr.bf16.mxu0 0
  %85 = vmatmul.mubr.bf16.gmra.mrb[0].mxu0 %v50
  %v86 = vpop.f32.mrb[0].mxu0
  %v87 = vadd.f32 %v29, %v86
  %v88 = vpop.f32.mrb[0].mxu0
  %v89 = vpop.f32.mrb[0].mxu0
  %v90 = vadd.f32 %v29, %v89
  %v91 = vpop.f32.mrb[0].mxu0
  %92 = vdwg.mxu0
  %v93 = vld [vmem:[%s3] sm:$0xf]
  %v94 = vld [vmem:[%s3 + $0x4] sm:$0x1]
  %v95 = vunpack.c.l.bf16 %v93
  %v96 = vunpack.c.l.bf16 %v94
  %v97 = vadd.f32 %v87, %v95
  %v98 = vadd.f32 %v90, %v96
  %v99 = vpack.c.bf16 %v98, %v97
  %v101 = vunpack.c.l.b16 %v99
  %v102 = vunpack.c.h.b16 %v99
  %v103 = vpack.c.b16 %v101, %v101
  %v104 = vpack.c.b16 %v102, %v102
  %vm107 = vcmask 257024
  %108 = vst.msk [vmem:[%s4] sm:$0xf] %vm107, %v103
  %vm109 = vcmask 253952
  %110 = vst.msk [vmem:[%s4 + $0x4] sm:$0x1] %vm109, %v104
  // Predicated region
  $region18: #{vit_classifier_forward.17} parent=0 // pred_check
    _
  $region19: #{vit_classifier_forward.17} parent=0 // pred_check_branch
    %112 = sbr.rel (0) target = $region21
  $region20: #{vit_classifier_forward.17} parent=0 // pred_region
    _
  $region21: #{vit_classifier_forward.17} parent=0 // pred_fallthru
    _
  // Predicated region
  $region22: #{vit_classifier_forward.17} parent=0 // pred_check
    _
  $region23: #{vit_classifier_forward.17} parent=0 // pred_check_branch
    %114 = sbr.rel (0) target = $region25
  $region24: #{vit_classifier_forward.17} parent=0 // pred_region
    _
  $region25: #{vit_classifier_forward.17} parent=0 // pred_fallthru
    _

// kernel: vit_classifier_forward.19
$region0: #{vit_classifier_forward.19}
  #allocation0 [shape = 'u32[]', space=smem, size = 0x4, offset = 0x4, fixed_abs, tag = 'smem constant byte address 0x4 - core index']
  #allocation1 [shape = 'u32[144,128]{1,0:T(1,128)}', space=vmem, size = 0x12000, scoped, tag = 'internal scratch']
  %s0 = inlined_call_operand.vmem [shape: bf16[10,64], index: 0, kind: input, shape index: {}]
  %s1 = inlined_call_operand.vmem [shape: bf16[64,32], index: 1, kind: input, shape index: {}]
  %s2 = inlined_call_operand.vmem [shape: f32[1,32], index: 2, kind: input, shape index: {}]
  %s3 = inlined_call_operand.vmem [shape: bf16[10,32], index: 3, kind: input, shape index: {}]
  %s4 = inlined_call_operand.vmem [shape: bf16[10,32], index: 4, kind: output, shape index: {}]
  %s5 = sld [smem:[#allocation0]]
  $region26: #{vit_classifier_forward.19} parent=0
    _
  %s7 = ssub.s32 1, %s5
  %s8 = scalar_select 0, %s7, %s5
  // Predicated region
  $region2: #{vit_classifier_forward.19} parent=0 // pred_check
    _
  $region3: #{vit_classifier_forward.19} parent=0 // pred_check_branch
    %10 = sbr.rel (0) target = $region5
  $region4: #{vit_classifier_forward.19} parent=0 // pred_region
    _
  $region5: #{vit_classifier_forward.19} parent=0 // pred_fallthru
    _
  // Predicated region
  $region6: #{vit_classifier_forward.19} parent=0 // pred_check
    _
  $region7: #{vit_classifier_forward.19} parent=0 // pred_check_branch
    %12 = sbr.rel (0) target = $region9
  $region8: #{vit_classifier_forward.19} parent=0 // pred_region
    _
  $region9: #{vit_classifier_forward.19} parent=0 // pred_fallthru
    _
  // Predicated region
  $region10: #{vit_classifier_forward.19} parent=0 // pred_check
    _
  $region11: #{vit_classifier_forward.19} parent=0 // pred_check_branch
    %14 = sbr.rel (0) target = $region13
  $region12: #{vit_classifier_forward.19} parent=0 // pred_region
    _
  $region13: #{vit_classifier_forward.19} parent=0 // pred_fallthru
    _
  // Predicated region
  $region14: #{vit_classifier_forward.19} parent=0 // pred_check
    _
  $region15: #{vit_classifier_forward.19} parent=0 // pred_check_branch
    %16 = sbr.rel (0) target = $region17
  $region16: #{vit_classifier_forward.19} parent=0 // pred_region
    _
  $region17: #{vit_classifier_forward.19} parent=0 // pred_fallthru
    _
  %v18 = vld [vmem:[%s0] sm:$0xf]
  %v19 = vld [vmem:[%s0 + $0x4] sm:$0x1]
  %v20 = vld [vmem:[%s1] sm:$0xf]
  %v21 = vld [vmem:[%s1 + $0x4] sm:$0xf]
  %v22 = vld [vmem:[%s1 + $0x8] sm:$0xf]
  %v23 = vld [vmem:[%s1 + $0xc] sm:$0xf]
  %v24 = vld [vmem:[%s1 + $0x10] sm:$0xf]
  %v25 = vld [vmem:[%s1 + $0x14] sm:$0xf]
  %v26 = vld [vmem:[%s1 + $0x18] sm:$0xf]
  %v27 = vld [vmem:[%s1 + $0x1c] sm:$0xf]
  %v28 = vld [vmem:[%s2] sm:$0x1]
  %v30 = vlaneseq
  %v31 = vshrl.u32 %v30, 7
  %v32 = vsub.s32 0, %v31
  %v33 = vrot.slane %v28, %v32
  %v37 = vunpack.c.l.b16 %v18
  %v38 = vunpack.c.l.b16 %v19
  %v39 = vpack.c.b16 %v38, %v37
  %v48 = vunpack.c.l.b16 %v20
  %v49 = vunpack.c.l.b16 %v21
  %v50 = vunpack.c.l.b16 %v22
  %v51 = vunpack.c.l.b16 %v23
  %v52 = vunpack.c.l.b16 %v24
  %v53 = vunpack.c.l.b16 %v25
  %v54 = vunpack.c.l.b16 %v26
  %v55 = vunpack.c.l.b16 %v27
  %v56 = vpack.c.b16 %v49, %v48
  %v57 = vpack.c.b16 %v51, %v50
  %v58 = vpack.c.b16 %v53, %v52
  %v59 = vpack.c.b16 %v55, %v54
  %vm64 = vcmask 523264
  %v66 = vsel %vm64, %v39, 0
  %68 = vmatprep.subr.bf16.mxu0 0
  %69 = vmatpush1.bf16.msra.mxu0 %v56
  %70 = vmatprep.subr.bf16.mxu0 0
  %71 = vmatpush1.bf16.msra.mxu0 %v57
  %72 = vmatprep.subr.bf16.mxu0 0
  %73 = vmatpush1.bf16.msra.mxu0 %v58
  %74 = vmatprep.subr.bf16.mxu0 0
  %75 = vmatpush1.bf16.msra.mxu0 %v59
  %76 = vmatprep.subr.bf16.mxu0 0
  %77 = vmatpush1.bf16.msra.mxu0 0
  %78 = vmatprep.subr.bf16.mxu0 0
  %79 = vmatpush1.bf16.msra.mxu0 0
  %80 = vmatprep.subr.bf16.mxu0 0
  %81 = vmatpush1.bf16.msra.mxu0 0
  %82 = vmatprep.subr.bf16.mxu0 0
  %83 = vmatpush1.bf16.msra.mxu0 0
  %84 = vmatprep.subr.bf16.mxu0 0
  %85 = vmatpush1.bf16.msra.mxu0 0
  %86 = vmatprep.subr.bf16.mxu0 0
  %87 = vmatpush1.bf16.msra.mxu0 0
  %88 = vmatprep.subr.bf16.mxu0 0
  %89 = vmatpush1.bf16.msra.mxu0 0
  %90 = vmatprep.subr.bf16.mxu0 0
  %91 = vmatpush1.bf16.msra.mxu0 0
  %92 = vmatprep.subr.bf16.mxu0 0
  %93 = vmatpush1.bf16.msra.mxu0 0
  %94 = vmatprep.subr.bf16.mxu0 0
  %95 = vmatpush1.bf16.msra.mxu0 0
  %96 = vmatprep.subr.bf16.mxu0 0
  %97 = vmatpush1.bf16.msra.mxu0 0
  %98 = vmatprep.subr.bf16.mxu0 0
  %99 = vmatpush1.bf16.msra.mxu0 0
  %100 = vmatprep.mubr.bf16.mxu0 0
  %101 = vmatmul.mubr.bf16.gmra.mrb[0].mxu0 %v66
  %v102 = vpop.f32.mrb[0].mxu0
  %v103 = vadd.f32 %v33, %v102
  %v104 = vpop.f32.mrb[0].mxu0
  %v105 = vpop.f32.mrb[0].mxu0
  %v106 = vadd.f32 %v33, %v105
  %v107 = vpop.f32.mrb[0].mxu0
  %108 = vdwg.mxu0
  %v109 = vld [vmem:[%s3] sm:$0xf]
  %v110 = vld [vmem:[%s3 + $0x4] sm:$0x1]
  %v111 = vunpack.c.l.bf16 %v109
  %v112 = vunpack.c.l.bf16 %v110
  %v113 = vadd.f32 %v103, %v111
  %v114 = vadd.f32 %v106, %v112
  %v115 = vpack.c.bf16 %v114, %v113
  %v117 = vunpack.c.l.b16 %v115
  %v118 = vunpack.c.h.b16 %v115
  %v119 = vpack.c.b16 %v117, %v117
  %v120 = vpack.c.b16 %v118, %v118
  %vm123 = vcmask 257024
  %124 = vst.msk [vmem:[%s4] sm:$0xf] %vm123, %v119
  %vm125 = vcmask 253952
  %126 = vst.msk [vmem:[%s4 + $0x4] sm:$0x1] %vm125, %v120
  // Predicated region
  $region18: #{vit_classifier_forward.19} parent=0 // pred_check
    _
  $region19: #{vit_classifier_forward.19} parent=0 // pred_check_branch
    %128 = sbr.rel (0) target = $region21
  $region20: #{vit_classifier_forward.19} parent=0 // pred_region
    _
  $region21: #{vit_classifier_forward.19} parent=0 // pred_fallthru
    _
  // Predicated region
  $region22: #{vit_classifier_forward.19} parent=0 // pred_check
    _
  $region23: #{vit_classifier_forward.19} parent=0 // pred_check_branch
    %130 = sbr.rel (0) target = $region25
  $region24: #{vit_classifier_forward.19} parent=0 // pred_region
    _
  $region25: #{vit_classifier_forward.19} parent=0 // pred_fallthru
    _

// kernel: vit_classifier_forward.18
$region0: #{vit_classifier_forward.18}
  #allocation0 [shape = 'u32[]', space=smem, size = 0x4, offset = 0x4, fixed_abs, tag = 'smem constant byte address 0x4 - core index']
  #allocation1 [shape = 'u32[144,128]{1,0:T(1,128)}', space=vmem, size = 0x12000, scoped, tag = 'internal scratch']
  %s0 = inlined_call_operand.vmem [shape: bf16[10,32], index: 0, kind: input, shape index: {}]
  %s1 = inlined_call_operand.vmem [shape: f32[1,32], index: 1, kind: input, shape index: {}]
  %s2 = inlined_call_operand.vmem [shape: f32[1,32], index: 2, kind: input, shape index: {}]
  %s3 = inlined_call_operand.vmem [shape: bf16[32,64], index: 3, kind: input, shape index: {}]
  %s4 = inlined_call_operand.vmem [shape: f32[1,64], index: 4, kind: input, shape index: {}]
  %s5 = inlined_call_operand.vmem [shape: bf16[10,64], index: 5, kind: output, shape index: {}]
  %s6 = sld [smem:[#allocation0]]
  $region30: #{vit_classifier_forward.18} parent=0
    _
  %s8 = ssub.s32 1, %s6
  %s9 = scalar_select 0, %s8, %s6
  // Predicated region
  $region2: #{vit_classifier_forward.18} parent=0 // pred_check
    _
  $region3: #{vit_classifier_forward.18} parent=0 // pred_check_branch
    %11 = sbr.rel (0) target = $region5
  $region4: #{vit_classifier_forward.18} parent=0 // pred_region
    _
  $region5: #{vit_classifier_forward.18} parent=0 // pred_fallthru
    _
  // Predicated region
  $region6: #{vit_classifier_forward.18} parent=0 // pred_check
    _
  $region7: #{vit_classifier_forward.18} parent=0 // pred_check_branch
    %13 = sbr.rel (0) target = $region9
  $region8: #{vit_classifier_forward.18} parent=0 // pred_region
    _
  $region9: #{vit_classifier_forward.18} parent=0 // pred_fallthru
    _
  // Predicated region
  $region10: #{vit_classifier_forward.18} parent=0 // pred_check
    _
  $region11: #{vit_classifier_forward.18} parent=0 // pred_check_branch
    %15 = sbr.rel (0) target = $region13
  $region12: #{vit_classifier_forward.18} parent=0 // pred_region
    _
  $region13: #{vit_classifier_forward.18} parent=0 // pred_fallthru
    _
  // Predicated region
  $region14: #{vit_classifier_forward.18} parent=0 // pred_check
    _
  $region15: #{vit_classifier_forward.18} parent=0 // pred_check_branch
    %17 = sbr.rel (0) target = $region17
  $region16: #{vit_classifier_forward.18} parent=0 // pred_region
    _
  $region17: #{vit_classifier_forward.18} parent=0 // pred_fallthru
    _
  // Predicated region
  $region18: #{vit_classifier_forward.18} parent=0 // pred_check
    _
  $region19: #{vit_classifier_forward.18} parent=0 // pred_check_branch
    %19 = sbr.rel (0) target = $region21
  $region20: #{vit_classifier_forward.18} parent=0 // pred_region
    _
  $region21: #{vit_classifier_forward.18} parent=0 // pred_fallthru
    _
  %v21 = vld [vmem:[%s0] sm:$0xf]
  %v22 = vld [vmem:[%s0 + $0x4] sm:$0x1]
  %v23 = vunpack.c.l.bf16 %v21
  %v24 = vunpack.c.l.bf16 %v22
  %vm25 = vcmask 261120
  %v26 = vsel %vm25, %v23, 0.0
  %27 = vadd.xlane.f32.xlu0 %v26
  %v28 = vpop.xlane.xlu0 %27
  %vm29 = vcmask 254976
  %v30 = vsel %vm29, %v24, 0.0
  %31 = vadd.xlane.f32.xlu0 %v30
  %v32 = vpop.xlane.xlu0 %31
  %v33 = vrcp.pop 32.0
  %v34 = vmul.f32 %v28, %v33
  %v35 = vmul.f32 %v32, %v33
  %v36 = vsub.f32 %v23, %v34
  %v37 = vsub.f32 %v24, %v35
  %v38 = vmul.f32 %v36, %v36
  %v39 = vmul.f32 %v37, %v37
  %v40 = vsel %vm25, %v38, 0.0
  %41 = vadd.xlane.f32.xlu0 %v40
  %v42 = vpop.xlane.xlu0 %41
  %v43 = vsel %vm29, %v39, 0.0
  %44 = vadd.xlane.f32.xlu0 %v43
  %v45 = vpop.xlane.xlu0 %44
  %v46 = vmul.f32 %v42, %v33
  %v47 = vmul.f32 %v45, %v33
  %v48 = vadd.f32 %v46, 1e-05
  %v49 = vadd.f32 %v47, 1e-05
  %v50 = vrsqrt.pop %v48
  %v51 = vrsqrt.pop %v49
  %v52 = vmul.f32 %v36, %v50
  %v53 = vmul.f32 %v37, %v51
  %v54 = vld [vmem:[%s1] sm:$0x1]
  %v56 = vlaneseq
  %v57 = vshrl.u32 %v56, 7
  %v58 = vsub.s32 0, %v57
  %v59 = vrot.slane %v54, %v58
  %v61 = vmul.f32 %v52, %v59
  %v62 = vmul.f32 %v53, %v59
  %v63 = vld [vmem:[%s2] sm:$0x1]
  %v65 = vlaneseq
  %v66 = vshrl.u32 %v65, 7
  %v67 = vsub.s32 0, %v66
  %v68 = vrot.slane %v63, %v67
  %v70 = vadd.f32 %v61, %v68
  %v71 = vadd.f32 %v62, %v68
  %v72 = vpack.c.bf16 %v71, %v70
  %v73 = vld [vmem:[%s3] sm:$0xf]
  %v74 = vld [vmem:[%s3 + $0x4] sm:$0xf]
  %v75 = vld [vmem:[%s3 + $0x8] sm:$0xf]
  %v76 = vld [vmem:[%s3 + $0xc] sm:$0xf]
  %v77 = vld [vmem:[%s4] sm:$0x1]
  %v79 = vlaneseq
  %v80 = vshrl.u32 %v79, 7
  %v81 = vsub.s32 0, %v80
  %v82 = vrot.slane %v77, %v81
  %v88 = vunpack.c.l.b16 %v73
  %v89 = vunpack.c.l.b16 %v74
  %v90 = vunpack.c.l.b16 %v75
  %v91 = vunpack.c.l.b16 %v76
  %v92 = vpack.c.b16 %v89, %v88
  %v93 = vpack.c.b16 %v91, %v90
  %v97 = vsel %vm25, %v72, 0
  %99 = vmatprep.subr.bf16.mxu0 0
  %100 = vmatpush1.bf16.msra.mxu0 %v92
  %101 = vmatprep.subr.bf16.mxu0 0
  %102 = vmatpush1.bf16.msra.mxu0 %v93
  %103 = vmatprep.subr.bf16.mxu0 0
  %104 = vmatpush1.bf16.msra.mxu0 0
  %105 = vmatprep.subr.bf16.mxu0 0
  %106 = vmatpush1.bf16.msra.mxu0 0
  %107 = vmatprep.subr.bf16.mxu0 0
  %108 = vmatpush1.bf16.msra.mxu0 0
  %109 = vmatprep.subr.bf16.mxu0 0
  %110 = vmatpush1.bf16.msra.mxu0 0
  %111 = vmatprep.subr.bf16.mxu0 0
  %112 = vmatpush1.bf16.msra.mxu0 0
  %113 = vmatprep.subr.bf16.mxu0 0
  %114 = vmatpush1.bf16.msra.mxu0 0
  %115 = vmatprep.subr.bf16.mxu0 0
  %116 = vmatpush1.bf16.msra.mxu0 0
  %117 = vmatprep.subr.bf16.mxu0 0
  %118 = vmatpush1.bf16.msra.mxu0 0
  %119 = vmatprep.subr.bf16.mxu0 0
  %120 = vmatpush1.bf16.msra.mxu0 0
  %121 = vmatprep.subr.bf16.mxu0 0
  %122 = vmatpush1.bf16.msra.mxu0 0
  %123 = vmatprep.subr.bf16.mxu0 0
  %124 = vmatpush1.bf16.msra.mxu0 0
  %125 = vmatprep.subr.bf16.mxu0 0
  %126 = vmatpush1.bf16.msra.mxu0 0
  %127 = vmatprep.subr.bf16.mxu0 0
  %128 = vmatpush1.bf16.msra.mxu0 0
  %129 = vmatprep.subr.bf16.mxu0 0
  %130 = vmatpush1.bf16.msra.mxu0 0
  %131 = vmatprep.mubr.bf16.mxu0 0
  %132 = vmatmul.mubr.bf16.gmra.mrb[0].mxu0 %v97
  %v133 = vpop.f32.mrb[0].mxu0
  %v134 = vadd.f32 %v82, %v133
  %v135 = vpop.f32.mrb[0].mxu0
  %v136 = vpop.f32.mrb[0].mxu0
  %v137 = vadd.f32 %v82, %v136
  %v138 = vpop.f32.mrb[0].mxu0
  %139 = vdwg.mxu0
  %v140 = vmul.f32 %v134, 0.5
  %v141 = vmul.f32 %v137, 0.5
  %v142 = vmul.f32 %v134, 0.70710677
  %v143 = vmul.f32 %v137, 0.70710677
  %vm144 = vcmp.ge.f32.partialorder %v142, 0.0
  %vm145 = vcmp.ge.f32.partialorder %v143, 0.0
  %v146 = vsel %vm144, 1.0, -1.0
  %v147 = vsel %vm145, 1.0, -1.0
  %v148 = vand.u32 2147483647, %v142
  %v149 = vand.u32 2147483647, %v143
  %v150 = vmul.f32 %v148, 0.3275911
  %v151 = vmul.f32 %v149, 0.3275911
  %v152 = vadd.f32 %v150, 1.0
  %v153 = vadd.f32 %v151, 1.0
  %v154 = vrcp.pop %v152
  %v155 = vmul.f32 1.0, %v154
  %v156 = vrcp.pop %v153
  %v157 = vmul.f32 1.0, %v156
  %v158 = vmul.f32 %v155, 1.0614054
  %v159 = vmul.f32 %v157, 1.0614054
  %v160 = vadd.f32 %v158, -1.4531521
  %v161 = vadd.f32 %v159, -1.4531521
  %v162 = vmul.f32 %v160, %v155
  %v163 = vmul.f32 %v161, %v157
  %v164 = vadd.f32 %v162, 1.4214138
  %v165 = vadd.f32 %v163, 1.4214138
  %v166 = vmul.f32 %v164, %v155
  %v167 = vmul.f32 %v165, %v157
  %v168 = vadd.f32 %v166, -0.28449672
  %v169 = vadd.f32 %v167, -0.28449672
  %v170 = vmul.f32 %v168, %v155
  %v171 = vmul.f32 %v169, %v157
  %v172 = vadd.f32 %v170, 0.2548296
  %v173 = vadd.f32 %v171, 0.2548296
  %v174 = vmul.f32 %v172, %v155
  %v175 = vmul.f32 %v173, %v157
  %v176 = vsub.f32 0.0, %v148
  %v177 = vsub.f32 0.0, %v149
  %v178 = vmul.f32 %v176, %v148
  %v179 = vmul.f32 %v177, %v149
  %v180 = vmul.f32 %v178, 1.442695
  %v181 = vpow.pop %v180
  %v182 = vmul.f32 %v179, 1.442695
  %v183 = vpow.pop %v182
  %v184 = vmul.f32 %v174, %v181
  %v185 = vmul.f32 %v175, %v183
  %v186 = vsub.f32 1.0, %v184
  %v187 = vsub.f32 1.0, %v185
  %v188 = vmul.f32 %v146, %v186
  %v189 = vmul.f32 %v147, %v187
  %v190 = vadd.f32 %v188, 1.0
  %v191 = vadd.f32 %v189, 1.0
  %v192 = vmul.f32 %v140, %v190
  %v193 = vmul.f32 %v141, %v191
  %v194 = vpack.c.bf16 %v193, %v192
  %v196 = vunpack.c.l.b16 %v194
  %v197 = vunpack.c.h.b16 %v194
  %v198 = vpack.c.b16 %v196, %v196
  %v199 = vpack.c.b16 %v197, %v197
  %vm202 = vcmask 519168
  %203 = vst.msk [vmem:[%s5] sm:$0xf] %vm202, %v198
  %vm204 = vcmask 516096
  %205 = vst.msk [vmem:[%s5 + $0x4] sm:$0x1] %vm204, %v199
  // Predicated region
  $region22: #{vit_classifier_forward.18} parent=0 // pred_check
    _
  $region23: #{vit_classifier_forward.18} parent=0 // pred_check_branch
    %207 = sbr.rel (0) target = $region25
  $region24: #{vit_classifier_forward.18} parent=0 // pred_region
    _
  $region25: #{vit_classifier_forward.18} parent=0 // pred_fallthru
    _
  // Predicated region
  $region26: #{vit_classifier_forward.18} parent=0 // pred_check
    _
  $region27: #{vit_classifier_forward.18} parent=0 // pred_check_branch
    %209 = sbr.rel (0) target = $region29
  $region28: #{vit_classifier_forward.18} parent=0 // pred_region
    _
  $region29: #{vit_classifier_forward.18} parent=0 // pred_fallthru
    _

// kernel: vit_classifier_forward.25
$region0: #{vit_classifier_forward.25}
  #allocation0 [shape = 'u32[]', space=smem, size = 0x4, offset = 0x4, fixed_abs, tag = 'smem constant byte address 0x4 - core index']
  #allocation1 [shape = 'u32[144,128]{1,0:T(1,128)}', space=vmem, size = 0x12000, scoped, tag = 'internal scratch']
  %s0 = inlined_call_operand.vmem [shape: bf16[2,32], index: 0, kind: input, shape index: {}]
  %s1 = inlined_call_operand.vmem [shape: f32[1,32], index: 1, kind: input, shape index: {}]
  %s2 = inlined_call_operand.vmem [shape: f32[1,32], index: 2, kind: input, shape index: {}]
  %s3 = inlined_call_operand.vmem [shape: bf16[32,16], index: 3, kind: input, shape index: {}]
  %s4 = inlined_call_operand.vmem [shape: f32[1,16], index: 4, kind: input, shape index: {}]
  %s5 = inlined_call_operand.hbm [shape: f32[2,16], index: 5, kind: output, shape index: {}]
  %s6 = sld [smem:[#allocation0]]
  $region30: #{vit_classifier_forward.25} parent=0
    _
  %s8 = ssub.s32 1, %s6
  %s9 = scalar_select 0, %s8, %s6
  $region1: #{vit_classifier_forward.25} parent=0
    #allocation2 [shape = 'u8[1024]{0}', space=vmem, size = 0x400, scoped, tag = 'output window, operand 0, single buffered']
    #allocation3 [shape = 's32[1]{0}', space=sflag, size = 0x4, scoped, tag = 'scoped memory for vit_classifier_forward.25']
    %10 = vsyncpa [#allocation3], 0
    // Predicated region
    $region2: #{vit_classifier_forward.25} parent=1 // pred_check
      _
    $region3: #{vit_classifier_forward.25} parent=1 // pred_check_branch
      %12 = sbr.rel (0) target = $region5
    $region4: #{vit_classifier_forward.25} parent=1 // pred_region
      _
    $region5: #{vit_classifier_forward.25} parent=1 // pred_fallthru
      _
    // Predicated region
    $region6: #{vit_classifier_forward.25} parent=1 // pred_check
      _
    $region7: #{vit_classifier_forward.25} parent=1 // pred_check_branch
      %14 = sbr.rel (0) target = $region9
    $region8: #{vit_classifier_forward.25} parent=1 // pred_region
      _
    $region9: #{vit_classifier_forward.25} parent=1 // pred_fallthru
      _
    // Predicated region
    $region10: #{vit_classifier_forward.25} parent=1 // pred_check
      _
    $region11: #{vit_classifier_forward.25} parent=1 // pred_check_branch
      %16 = sbr.rel (0) target = $region13
    $region12: #{vit_classifier_forward.25} parent=1 // pred_region
      _
    $region13: #{vit_classifier_forward.25} parent=1 // pred_fallthru
      _
    // Predicated region
    $region14: #{vit_classifier_forward.25} parent=1 // pred_check
      _
    $region15: #{vit_classifier_forward.25} parent=1 // pred_check_branch
      %18 = sbr.rel (0) target = $region17
    $region16: #{vit_classifier_forward.25} parent=1 // pred_region
      _
    $region17: #{vit_classifier_forward.25} parent=1 // pred_fallthru
      _
    // Predicated region
    $region18: #{vit_classifier_forward.25} parent=1 // pred_check
      _
    $region19: #{vit_classifier_forward.25} parent=1 // pred_check_branch
      %20 = sbr.rel (0) target = $region21
    $region20: #{vit_classifier_forward.25} parent=1 // pred_region
      _
    $region21: #{vit_classifier_forward.25} parent=1 // pred_fallthru
      _
    %v22 = vld [vmem:[%s0] sm:$0x1]
    %v23 = vunpack.c.l.bf16 %v22
    %vm24 = vcmask 254976
    %v25 = vsel %vm24, %v23, 0.0
    %26 = vadd.xlane.f32.xlu0 %v25
    %v27 = vpop.xlane.xlu0 %26
    %v28 = vrcp.pop 32.0
    %v29 = vmul.f32 %v27, %v28
    %v30 = vsub.f32 %v23, %v29
    %v31 = vmul.f32 %v30, %v30
    %v32 = vsel %vm24, %v31, 0.0
    %33 = vadd.xlane.f32.xlu0 %v32
    %v34 = vpop.xlane.xlu0 %33
    %v35 = vmul.f32 %v34, %v28
    %v36 = vadd.f32 %v35, 1e-05
    %v37 = vrsqrt.pop %v36
    %v38 = vmul.f32 %v30, %v37
    %v39 = vld [vmem:[%s1] sm:$0x1]
    %v41 = vlaneseq
    %v42 = vshrl.u32 %v41, 7
    %v43 = vsub.s32 0, %v42
    %v44 = vrot.slane %v39, %v43
    %v46 = vmul.f32 %v38, %v44
    %v47 = vld [vmem:[%s2] sm:$0x1]
    %v49 = vlaneseq
    %v50 = vshrl.u32 %v49, 7
    %v51 = vsub.s32 0, %v50
    %v52 = vrot.slane %v47, %v51
    %v54 = vadd.f32 %v46, %v52
    %v55 = vpack.c.bf16 %v54, %v54
    %v56 = vld [vmem:[%s3] sm:$0xf]
    %v57 = vld [vmem:[%s3 + $0x4] sm:$0xf]
    %v58 = vld [vmem:[%s3 + $0x8] sm:$0xf]
    %v59 = vld [vmem:[%s3 + $0xc] sm:$0xf]
    %v60 = vld [vmem:[%s4] sm:$0x1]
    %v62 = vlaneseq
    %v63 = vshrl.u32 %v62, 7
    %v64 = vsub.s32 0, %v63
    %v65 = vrot.slane %v60, %v64
    %v71 = vunpack.c.l.b16 %v56
    %v72 = vunpack.c.l.b16 %v57
    %v73 = vunpack.c.l.b16 %v58
    %v74 = vunpack.c.l.b16 %v59
    %v75 = vpack.c.b16 %v72, %v71
    %v76 = vpack.c.b16 %v74, %v73
    %vm79 = vcmask 261120
    %v81 = vsel %vm79, %v55, 0
    %83 = vmatprep.subr.bf16.mxu0 0
    %84 = vmatpush1.bf16.msra.mxu0 %v75
    %85 = vmatprep.subr.bf16.mxu0 0
    %86 = vmatpush1.bf16.msra.mxu0 %v76
    %87 = vmatprep.subr.bf16.mxu0 0
    %88 = vmatpush1.bf16.msra.mxu0 0
    %89 = vmatprep.subr.bf16.mxu0 0
    %90 = vmatpush1.bf16.msra.mxu0 0
    %91 = vmatprep.subr.bf16.mxu0 0
    %92 = vmatpush1.bf16.msra.mxu0 0
    %93 = vmatprep.subr.bf16.mxu0 0
    %94 = vmatpush1.bf16.msra.mxu0 0
    %95 = vmatprep.subr.bf16.mxu0 0
    %96 = vmatpush1.bf16.msra.mxu0 0
    %97 = vmatprep.subr.bf16.mxu0 0
    %98 = vmatpush1.bf16.msra.mxu0 0
    %99 = vmatprep.subr.bf16.mxu0 0
    %100 = vmatpush1.bf16.msra.mxu0 0
    %101 = vmatprep.subr.bf16.mxu0 0
    %102 = vmatpush1.bf16.msra.mxu0 0
    %103 = vmatprep.subr.bf16.mxu0 0
    %104 = vmatpush1.bf16.msra.mxu0 0
    %105 = vmatprep.subr.bf16.mxu0 0
    %106 = vmatpush1.bf16.msra.mxu0 0
    %107 = vmatprep.subr.bf16.mxu0 0
    %108 = vmatpush1.bf16.msra.mxu0 0
    %109 = vmatprep.subr.bf16.mxu0 0
    %110 = vmatpush1.bf16.msra.mxu0 0
    %111 = vmatprep.subr.bf16.mxu0 0
    %112 = vmatpush1.bf16.msra.mxu0 0
    %113 = vmatprep.subr.bf16.mxu0 0
    %114 = vmatpush1.bf16.msra.mxu0 0
    %115 = vmatprep.mubr.bf16.mxu0 0
    %116 = vmatmul.mubr.bf16.gmra.mrb[0].mxu0 %v81
    %v117 = vpop.f32.mrb[0].mxu0
    %v118 = vadd.f32 %v65, %v117
    %v119 = vpop.f32.mrb[0].mxu0
    %v120 = vpop.f32.mrb[0].mxu0
    %v121 = vpop.f32.mrb[0].mxu0
    %122 = vdwg.mxu0
    %vm123 = vcmask 123904
    %124 = vst.msk [vmem:[#allocation2] sm:$0x3] %vm123, %v118
    // Predicated region
    $region22: #{vit_classifier_forward.25} parent=1 // pred_check
      _
    $region23: #{vit_classifier_forward.25} parent=1 // pred_check_branch
      %126 = sbr.rel (0) target = $region25
    $region24: #{vit_classifier_forward.25} parent=1 // pred_region
      %s128 = ssub.s32 32, 32
      %129 = vsyncadd [#allocation3], %s128
      %s131 = sshll.u32 [#allocation2], 4
      %s132 = int_to_ptr.vmem [resolvable:$true] %s131
      %134 = dma.vmem_to_hbm [thread:$0]  %s132, 32, %s5, [#allocation3]
    $region25: #{vit_classifier_forward.25} parent=1 // pred_fallthru
      _
    // Predicated region
    $region26: #{vit_classifier_forward.25} parent=1 // pred_check
      _
    $region27: #{vit_classifier_forward.25} parent=1 // pred_check_branch
      %136 = sbr.rel (0) target = $region29
    $region28: #{vit_classifier_forward.25} parent=1 // pred_region
      %137 = dma.done [#allocation3], 32
    $region29: #{vit_classifier_forward.25} parent=1 // pred_fallthru
      _
    %138 = vsyncpa [#allocation3], 1

</llo_original>
